<compile_context>
chip_gen: v7x
topology: tpu7x:2x2x1
jax: 0.10.0
libtpu: 0.0.40
codegen_flags: <defaults>
</compile_context>

<pallas_src>
import functools

import jax
import jax.numpy as jnp
from jax.experimental import pallas as pl
from jax.experimental.pallas import tpu as pltpu

IN_DIM, HIDD_DIM, OUT_DIM = 784, 100, 10
LANE = 128
IN_PAD = 896    # 784 -> 7*128 (clean K tiling for layer 1)
HIDD_PAD = 128  # 100 -> 128
OUT_PAD = 128   # 10  -> 128


def _round_up(n, m):
    return ((n + m - 1) // m) * m


def _mlp_kernel(x_ref,
                w1_ref, b1_ref, w2_ref, b2_ref, w3_ref, b3_ref,
                w4_ref, b4_ref, w5_ref, b5_ref, w6_ref, b6_ref,
                out_ref, fc1_ref, fc2_ref, fc3_ref, fc4_ref, fc5_ref):
    """One batch tile: 6 back-to-back bf16 matmuls on the MXU, f32 accumulation."""
    compute_dtype = x_ref.dtype  # bf16

    def linear(h, w_ref, b_ref):
        # bf16 x bf16 -> f32 accumulate on the MXU, then f32 bias add.
        return jnp.dot(h, w_ref[...], preferred_element_type=jnp.float32) + b_ref[...]

    x_fc1 = linear(x_ref[...], w1_ref, b1_ref)
    fc1_ref[...] = x_fc1

    x_fc2 = linear(jnp.maximum(x_fc1, 0.0).astype(compute_dtype), w2_ref, b2_ref)
    fc2_ref[...] = x_fc2

    x_fc3 = linear(jnp.maximum(x_fc2, 0.0).astype(compute_dtype), w3_ref, b3_ref)
    fc3_ref[...] = x_fc3

    x_fc4 = linear(jnp.maximum(x_fc3, 0.0).astype(compute_dtype), w4_ref, b4_ref)
    fc4_ref[...] = x_fc4

    x_fc5 = linear(jnp.maximum(x_fc4, 0.0).astype(compute_dtype), w5_ref, b5_ref)
    fc5_ref[...] = x_fc5

    out_ref[...] = linear(jnp.maximum(x_fc5, 0.0).astype(compute_dtype), w6_ref, b6_ref)


def init_params(key):
    """Deterministic params. PyTorch Linear: W is (out, in); we store W.T = (in, out)."""
    dims = [(IN_DIM, HIDD_DIM), (HIDD_DIM, HIDD_DIM), (HIDD_DIM, HIDD_DIM),
            (HIDD_DIM, HIDD_DIM), (HIDD_DIM, HIDD_DIM), (HIDD_DIM, OUT_DIM)]
    params = []
    for (fan_in, fan_out) in dims:
        key, kw, kb = jax.random.split(key, 3)
        bound = 1.0 / jnp.sqrt(fan_in)  # matches nn.Linear default init range
        w_t = jax.random.uniform(kw, (fan_in, fan_out), jnp.float32, -bound, bound)
        b = jax.random.uniform(kb, (1, fan_out), jnp.float32, -bound, bound)
        params.append((w_t, b))
    return params


def prepare_params(params, compute_dtype=jnp.bfloat16):
    """Zero-pad every (in, out) weight / (1, out) bias to lane-aligned shapes and
    cast the weights to the bf16 compute dtype (biases stay f32: added post-accum)."""
    in_dims = [IN_PAD] + [HIDD_PAD] * 5
    out_dims = [HIDD_PAD] * 5 + [OUT_PAD]
    prepped = []
    for (w, b), ip, op in zip(params, in_dims, out_dims):
        w_p = jnp.zeros((ip, op), jnp.float32).at[:w.shape[0], :w.shape[1]].set(w)
        b_p = jnp.zeros((1, op), jnp.float32).at[:, :b.shape[1]].set(b)
        prepped.append((w_p.astype(compute_dtype), b_p))
    return prepped


def mnist_six_feedforward(x, prepped_params, *, block_b=256,
                          compute_dtype=jnp.bfloat16):
    """x: (B, 784) float32. prepped_params: output of prepare_params().
    Returns (logits (B, 10) f32, [x_fc1..x_fc5] each (B, 100) f32)."""
    B = x.shape[0]
    # Batch tile: multiple of 8 sublanes; 256 fills the M side of the v6e/v7x MXU.
    TB = min(block_b, _round_up(B, 8))
    B_pad = _round_up(B, TB)

    # Zero-pad batch to a tile multiple and the feature dim to 896, cast to bf16.
    x_p = jnp.zeros((B_pad, IN_PAD), compute_dtype).at[:B, :IN_DIM].set(
        x.astype(compute_dtype))

    flat_params = []
    for w, b in prepped_params:
        flat_params.extend([w, b])

    grid = (B_pad // TB,)

    def batch_spec(d):
        return pl.BlockSpec((TB, d), lambda i: (i, 0))

    def resident_spec(shape):
        # Constant index_map: block index never changes, so weights/biases are
        # fetched once and stay resident in VMEM across grid iterations.
        return pl.BlockSpec(shape, lambda i: (0, 0))

    in_specs = [batch_spec(IN_PAD)]
    for w, b in prepped_params:
        in_specs.append(resident_spec(w.shape))
        in_specs.append(resident_spec(b.shape))

    # Intermediates stay lane-padded (128-wide) and f32 for fidelity of the
    # pre-ReLU values the module exposes; sliced back to 100/10 below.
    out_shapes = (
        jax.ShapeDtypeStruct((B_pad, OUT_PAD), jnp.float32),
        *[jax.ShapeDtypeStruct((B_pad, HIDD_PAD), jnp.float32) for _ in range(5)],
    )
    out_specs = (
        batch_spec(OUT_PAD),
        *[batch_spec(HIDD_PAD) for _ in range(5)],
    )

    outs = pl.pallas_call(
        _mlp_kernel,
        grid=grid,
        out_shape=out_shapes,
        in_specs=in_specs,
        out_specs=out_specs,
        compiler_params=pltpu.CompilerParams(
            dimension_semantics=("parallel",),        # 2 TCs on v7x; no-op elsewhere
            vmem_limit_bytes=32 * 1024 * 1024,        # safe on v7x's 64 MiB VMEM
        ),
    )(x_p, *flat_params)

    logits = outs[0][:B, :OUT_DIM]
    intermediates = [o[:B, :HIDD_DIM] for o in outs[1:]]
    return logits, intermediates


def reference(x, params, compute_dtype=jnp.bfloat16):
    """Plain-JAX reference mirroring the kernel numerics (bf16 operands, f32 accum)."""
    acts = []
    h = x.astype(compute_dtype)
    for i, (w, b) in enumerate(params):
        if i > 0:
            h = jnp.maximum(h, 0.0).astype(compute_dtype)
        h = jnp.dot(h, w.astype(compute_dtype),
                    preferred_element_type=jnp.float32) + b
        if i < 5:
            acts.append(h)
    return h, acts


if __name__ == "__main__":
    key = jax.random.PRNGKey(0)
    key, kx = jax.random.split(key)
    B = 2
    x = jax.random.normal(kx, (B, IN_DIM), jnp.float32)

    params = init_params(jax.random.PRNGKey(0))
    prepped = prepare_params(params)

    fwd = jax.jit(functools.partial(mnist_six_feedforward))
    logits, intermediates = fwd(x, prepped)
    jax.block_until_ready(logits)
    jax.block_until_ready(intermediates)

    ref_logits, ref_acts = reference(x, params)

    assert logits.shape == (B, OUT_DIM)
    assert len(intermediates) == 5
    assert all(a.shape == (B, HIDD_DIM) for a in intermediates)
    assert jnp.allclose(logits, ref_logits, atol=5e-3, rtol=5e-3), (
        float(jnp.max(jnp.abs(logits - ref_logits))))
    for a, r in zip(intermediates, ref_acts):
        assert jnp.allclose(a, r, atol=5e-3, rtol=5e-3), (
            float(jnp.max(jnp.abs(a - r))))

    print("KERNEL_OK")
</pallas_src>

<mosaic_0001>
module attributes {stable_mosaic.version = 11 : i64} {
  func.func @_mlp_kernel(%arg0: i32, %arg1: memref<8x896xbf16, #tpu.memory_space<vmem>>, %arg2: memref<896x128xbf16, #tpu.memory_space<vmem>>, %arg3: memref<1x128xf32, #tpu.memory_space<vmem>>, %arg4: memref<128x128xbf16, #tpu.memory_space<vmem>>, %arg5: memref<1x128xf32, #tpu.memory_space<vmem>>, %arg6: memref<128x128xbf16, #tpu.memory_space<vmem>>, %arg7: memref<1x128xf32, #tpu.memory_space<vmem>>, %arg8: memref<128x128xbf16, #tpu.memory_space<vmem>>, %arg9: memref<1x128xf32, #tpu.memory_space<vmem>>, %arg10: memref<128x128xbf16, #tpu.memory_space<vmem>>, %arg11: memref<1x128xf32, #tpu.memory_space<vmem>>, %arg12: memref<128x128xbf16, #tpu.memory_space<vmem>>, %arg13: memref<1x128xf32, #tpu.memory_space<vmem>>, %arg14: memref<8x128xf32, #tpu.memory_space<vmem>>, %arg15: memref<8x128xf32, #tpu.memory_space<vmem>>, %arg16: memref<8x128xf32, #tpu.memory_space<vmem>>, %arg17: memref<8x128xf32, #tpu.memory_space<vmem>>, %arg18: memref<8x128xf32, #tpu.memory_space<vmem>>, %arg19: memref<8x128xf32, #tpu.memory_space<vmem>>) attributes {dimension_semantics = [#tpu.dimension_semantics<parallel>], iteration_bounds = array<i64: 1>, scalar_prefetch = 0 : i64, scratch_operands = 0 : i64, tpu.core_type = #tpu.core_type<tc>, window_params = [{transform_indices = @transform_0, window_bounds = array<i64: 8, 896>}, {pipeline_mode = #tpu.pipeline_mode<synchronous>, transform_indices = @transform_1, window_bounds = array<i64: 896, 128>}, {pipeline_mode = #tpu.pipeline_mode<synchronous>, transform_indices = @transform_2, window_bounds = array<i64: 1, 128>}, {pipeline_mode = #tpu.pipeline_mode<synchronous>, transform_indices = @transform_3, window_bounds = array<i64: 128, 128>}, {pipeline_mode = #tpu.pipeline_mode<synchronous>, transform_indices = @transform_4, window_bounds = array<i64: 1, 128>}, {pipeline_mode = #tpu.pipeline_mode<synchronous>, transform_indices = @transform_5, window_bounds = array<i64: 128, 128>}, {pipeline_mode = #tpu.pipeline_mode<synchronous>, transform_indices = @transform_6, window_bounds = array<i64: 1, 128>}, {pipeline_mode = #tpu.pipeline_mode<synchronous>, transform_indices = @transform_7, window_bounds = array<i64: 128, 128>}, {pipeline_mode = #tpu.pipeline_mode<synchronous>, transform_indices = @transform_8, window_bounds = array<i64: 1, 128>}, {pipeline_mode = #tpu.pipeline_mode<synchronous>, transform_indices = @transform_9, window_bounds = array<i64: 128, 128>}, {pipeline_mode = #tpu.pipeline_mode<synchronous>, transform_indices = @transform_10, window_bounds = array<i64: 1, 128>}, {pipeline_mode = #tpu.pipeline_mode<synchronous>, transform_indices = @transform_11, window_bounds = array<i64: 128, 128>}, {pipeline_mode = #tpu.pipeline_mode<synchronous>, transform_indices = @transform_12, window_bounds = array<i64: 1, 128>}, {transform_indices = @transform_13, window_bounds = array<i64: 8, 128>}, {transform_indices = @transform_14, window_bounds = array<i64: 8, 128>}, {transform_indices = @transform_15, window_bounds = array<i64: 8, 128>}, {transform_indices = @transform_16, window_bounds = array<i64: 8, 128>}, {transform_indices = @transform_17, window_bounds = array<i64: 8, 128>}, {transform_indices = @transform_18, window_bounds = array<i64: 8, 128>}]} {
    %c0 = arith.constant 0 : index
    %c0_0 = arith.constant 0 : index
    %0 = vector.load %arg1[%c0, %c0_0] : memref<8x896xbf16, #tpu.memory_space<vmem>>, vector<8x896xbf16>
    %c0_1 = arith.constant 0 : index
    %c0_2 = arith.constant 0 : index
    %1 = vector.load %arg2[%c0_1, %c0_2] : memref<896x128xbf16, #tpu.memory_space<vmem>>, vector<896x128xbf16>
    %cst = arith.constant dense<0.000000e+00> : vector<8x128xf32>
    %2 = tpu.matmul %0, %1, %cst {dimension_numbers = #tpu.dot_dimension_numbers<[1], [0], [0], [1], [0, 0, 1, 1], [], []>} : vector<8x896xbf16>, vector<896x128xbf16>, vector<8x128xf32> -> vector<8x128xf32>
    %c0_3 = arith.constant 0 : index
    %c0_4 = arith.constant 0 : index
    %3 = vector.load %arg3[%c0_3, %c0_4] : memref<1x128xf32, #tpu.memory_space<vmem>>, vector<1x128xf32>
    %4 = vector.broadcast %3 : vector<1x128xf32> to vector<8x128xf32>
    %5 = arith.addf %2, %4 : vector<8x128xf32>
    %c0_5 = arith.constant 0 : index
    %c0_6 = arith.constant 0 : index
    %6 = vector.load %arg15[%c0_5, %c0_6] : memref<8x128xf32, #tpu.memory_space<vmem>>, vector<8x128xf32>
    tpu.vector_store %arg15[%c0_5, %c0_6], %5 {strides = array<i32>} : memref<8x128xf32, #tpu.memory_space<vmem>>, vector<8x128xf32>,
    %cst_7 = arith.constant 0.000000e+00 : f32
    %7 = vector.broadcast %cst_7 : f32 to vector<8x128xf32>
    %8 = arith.maximumf %5, %7 : vector<8x128xf32>
    %9 = arith.truncf %8 : vector<8x128xf32> to vector<8x128xbf16>
    %c0_8 = arith.constant 0 : index
    %c0_9 = arith.constant 0 : index
    %10 = vector.load %arg4[%c0_8, %c0_9] : memref<128x128xbf16, #tpu.memory_space<vmem>>, vector<128x128xbf16>
    %cst_10 = arith.constant dense<0.000000e+00> : vector<8x128xf32>
    %11 = tpu.matmul %9, %10, %cst_10 {dimension_numbers = #tpu.dot_dimension_numbers<[1], [0], [0], [1], [0, 0, 1, 1], [], []>} : vector<8x128xbf16>, vector<128x128xbf16>, vector<8x128xf32> -> vector<8x128xf32>
    %c0_11 = arith.constant 0 : index
    %c0_12 = arith.constant 0 : index
    %12 = vector.load %arg5[%c0_11, %c0_12] : memref<1x128xf32, #tpu.memory_space<vmem>>, vector<1x128xf32>
    %13 = vector.broadcast %12 : vector<1x128xf32> to vector<8x128xf32>
    %14 = arith.addf %11, %13 : vector<8x128xf32>
    %c0_13 = arith.constant 0 : index
    %c0_14 = arith.constant 0 : index
    %15 = vector.load %arg16[%c0_13, %c0_14] : memref<8x128xf32, #tpu.memory_space<vmem>>, vector<8x128xf32>
    tpu.vector_store %arg16[%c0_13, %c0_14], %14 {strides = array<i32>} : memref<8x128xf32, #tpu.memory_space<vmem>>, vector<8x128xf32>,
    %cst_15 = arith.constant 0.000000e+00 : f32
    %16 = vector.broadcast %cst_15 : f32 to vector<8x128xf32>
    %17 = arith.maximumf %14, %16 : vector<8x128xf32>
    %18 = arith.truncf %17 : vector<8x128xf32> to vector<8x128xbf16>
    %c0_16 = arith.constant 0 : index
    %c0_17 = arith.constant 0 : index
    %19 = vector.load %arg6[%c0_16, %c0_17] : memref<128x128xbf16, #tpu.memory_space<vmem>>, vector<128x128xbf16>
    %cst_18 = arith.constant dense<0.000000e+00> : vector<8x128xf32>
    %20 = tpu.matmul %18, %19, %cst_18 {dimension_numbers = #tpu.dot_dimension_numbers<[1], [0], [0], [1], [0, 0, 1, 1], [], []>} : vector<8x128xbf16>, vector<128x128xbf16>, vector<8x128xf32> -> vector<8x128xf32>
    %c0_19 = arith.constant 0 : index
    %c0_20 = arith.constant 0 : index
    %21 = vector.load %arg7[%c0_19, %c0_20] : memref<1x128xf32, #tpu.memory_space<vmem>>, vector<1x128xf32>
    %22 = vector.broadcast %21 : vector<1x128xf32> to vector<8x128xf32>
    %23 = arith.addf %20, %22 : vector<8x128xf32>
    %c0_21 = arith.constant 0 : index
    %c0_22 = arith.constant 0 : index
    %24 = vector.load %arg17[%c0_21, %c0_22] : memref<8x128xf32, #tpu.memory_space<vmem>>, vector<8x128xf32>
    tpu.vector_store %arg17[%c0_21, %c0_22], %23 {strides = array<i32>} : memref<8x128xf32, #tpu.memory_space<vmem>>, vector<8x128xf32>,
    %cst_23 = arith.constant 0.000000e+00 : f32
    %25 = vector.broadcast %cst_23 : f32 to vector<8x128xf32>
    %26 = arith.maximumf %23, %25 : vector<8x128xf32>
    %27 = arith.truncf %26 : vector<8x128xf32> to vector<8x128xbf16>
    %c0_24 = arith.constant 0 : index
    %c0_25 = arith.constant 0 : index
    %28 = vector.load %arg8[%c0_24, %c0_25] : memref<128x128xbf16, #tpu.memory_space<vmem>>, vector<128x128xbf16>
    %cst_26 = arith.constant dense<0.000000e+00> : vector<8x128xf32>
    %29 = tpu.matmul %27, %28, %cst_26 {dimension_numbers = #tpu.dot_dimension_numbers<[1], [0], [0], [1], [0, 0, 1, 1], [], []>} : vector<8x128xbf16>, vector<128x128xbf16>, vector<8x128xf32> -> vector<8x128xf32>
    %c0_27 = arith.constant 0 : index
    %c0_28 = arith.constant 0 : index
    %30 = vector.load %arg9[%c0_27, %c0_28] : memref<1x128xf32, #tpu.memory_space<vmem>>, vector<1x128xf32>
    %31 = vector.broadcast %30 : vector<1x128xf32> to vector<8x128xf32>
    %32 = arith.addf %29, %31 : vector<8x128xf32>
    %c0_29 = arith.constant 0 : index
    %c0_30 = arith.constant 0 : index
    %33 = vector.load %arg18[%c0_29, %c0_30] : memref<8x128xf32, #tpu.memory_space<vmem>>, vector<8x128xf32>
    tpu.vector_store %arg18[%c0_29, %c0_30], %32 {strides = array<i32>} : memref<8x128xf32, #tpu.memory_space<vmem>>, vector<8x128xf32>,
    %cst_31 = arith.constant 0.000000e+00 : f32
    %34 = vector.broadcast %cst_31 : f32 to vector<8x128xf32>
    %35 = arith.maximumf %32, %34 : vector<8x128xf32>
    %36 = arith.truncf %35 : vector<8x128xf32> to vector<8x128xbf16>
    %c0_32 = arith.constant 0 : index
    %c0_33 = arith.constant 0 : index
    %37 = vector.load %arg10[%c0_32, %c0_33] : memref<128x128xbf16, #tpu.memory_space<vmem>>, vector<128x128xbf16>
    %cst_34 = arith.constant dense<0.000000e+00> : vector<8x128xf32>
    %38 = tpu.matmul %36, %37, %cst_34 {dimension_numbers = #tpu.dot_dimension_numbers<[1], [0], [0], [1], [0, 0, 1, 1], [], []>} : vector<8x128xbf16>, vector<128x128xbf16>, vector<8x128xf32> -> vector<8x128xf32>
    %c0_35 = arith.constant 0 : index
    %c0_36 = arith.constant 0 : index
    %39 = vector.load %arg11[%c0_35, %c0_36] : memref<1x128xf32, #tpu.memory_space<vmem>>, vector<1x128xf32>
    %40 = vector.broadcast %39 : vector<1x128xf32> to vector<8x128xf32>
    %41 = arith.addf %38, %40 : vector<8x128xf32>
    %c0_37 = arith.constant 0 : index
    %c0_38 = arith.constant 0 : index
    %42 = vector.load %arg19[%c0_37, %c0_38] : memref<8x128xf32, #tpu.memory_space<vmem>>, vector<8x128xf32>
    tpu.vector_store %arg19[%c0_37, %c0_38], %41 {strides = array<i32>} : memref<8x128xf32, #tpu.memory_space<vmem>>, vector<8x128xf32>,
    %cst_39 = arith.constant 0.000000e+00 : f32
    %43 = vector.broadcast %cst_39 : f32 to vector<8x128xf32>
    %44 = arith.maximumf %41, %43 : vector<8x128xf32>
    %45 = arith.truncf %44 : vector<8x128xf32> to vector<8x128xbf16>
    %c0_40 = arith.constant 0 : index
    %c0_41 = arith.constant 0 : index
    %46 = vector.load %arg12[%c0_40, %c0_41] : memref<128x128xbf16, #tpu.memory_space<vmem>>, vector<128x128xbf16>
    %cst_42 = arith.constant dense<0.000000e+00> : vector<8x128xf32>
    %47 = tpu.matmul %45, %46, %cst_42 {dimension_numbers = #tpu.dot_dimension_numbers<[1], [0], [0], [1], [0, 0, 1, 1], [], []>} : vector<8x128xbf16>, vector<128x128xbf16>, vector<8x128xf32> -> vector<8x128xf32>
    %c0_43 = arith.constant 0 : index
    %c0_44 = arith.constant 0 : index
    %48 = vector.load %arg13[%c0_43, %c0_44] : memref<1x128xf32, #tpu.memory_space<vmem>>, vector<1x128xf32>
    %49 = vector.broadcast %48 : vector<1x128xf32> to vector<8x128xf32>
    %50 = arith.addf %47, %49 : vector<8x128xf32>
    %c0_45 = arith.constant 0 : index
    %c0_46 = arith.constant 0 : index
    %51 = vector.load %arg14[%c0_45, %c0_46] : memref<8x128xf32, #tpu.memory_space<vmem>>, vector<8x128xf32>
    tpu.vector_store %arg14[%c0_45, %c0_46], %50 {strides = array<i32>} : memref<8x128xf32, #tpu.memory_space<vmem>>, vector<8x128xf32>,
    return
  }
  func.func @transform_0(%arg0: i32) -> (i32, i32) {
    %c0_i32 = arith.constant 0 : i32
    %c0_i32_0 = arith.constant 0 : i32
    return %arg0, %c0_i32 : i32, i32
  }
  func.func @transform_1(%arg0: i32) -> (i32, i32) {
    %c0_i32 = arith.constant 0 : i32
    %c0_i32_0 = arith.constant 0 : i32
    %c0_i32_1 = arith.constant 0 : i32
    return %c0_i32, %c0_i32_0 : i32, i32
  }
  func.func @transform_2(%arg0: i32) -> (i32, i32) {
    %c0_i32 = arith.constant 0 : i32
    %c0_i32_0 = arith.constant 0 : i32
    %c0_i32_1 = arith.constant 0 : i32
    return %c0_i32, %c0_i32_0 : i32, i32
  }
  func.func @transform_3(%arg0: i32) -> (i32, i32) {
    %c0_i32 = arith.constant 0 : i32
    %c0_i32_0 = arith.constant 0 : i32
    %c0_i32_1 = arith.constant 0 : i32
    return %c0_i32, %c0_i32_0 : i32, i32
  }
  func.func @transform_4(%arg0: i32) -> (i32, i32) {
    %c0_i32 = arith.constant 0 : i32
    %c0_i32_0 = arith.constant 0 : i32
    %c0_i32_1 = arith.constant 0 : i32
    return %c0_i32, %c0_i32_0 : i32, i32
  }
  func.func @transform_5(%arg0: i32) -> (i32, i32) {
    %c0_i32 = arith.constant 0 : i32
    %c0_i32_0 = arith.constant 0 : i32
    %c0_i32_1 = arith.constant 0 : i32
    return %c0_i32, %c0_i32_0 : i32, i32
  }
  func.func @transform_6(%arg0: i32) -> (i32, i32) {
    %c0_i32 = arith.constant 0 : i32
    %c0_i32_0 = arith.constant 0 : i32
    %c0_i32_1 = arith.constant 0 : i32
    return %c0_i32, %c0_i32_0 : i32, i32
  }
  func.func @transform_7(%arg0: i32) -> (i32, i32) {
    %c0_i32 = arith.constant 0 : i32
    %c0_i32_0 = arith.constant 0 : i32
    %c0_i32_1 = arith.constant 0 : i32
    return %c0_i32, %c0_i32_0 : i32, i32
  }
  func.func @transform_8(%arg0: i32) -> (i32, i32) {
    %c0_i32 = arith.constant 0 : i32
    %c0_i32_0 = arith.constant 0 : i32
    %c0_i32_1 = arith.constant 0 : i32
    return %c0_i32, %c0_i32_0 : i32, i32
  }
  func.func @transform_9(%arg0: i32) -> (i32, i32) {
    %c0_i32 = arith.constant 0 : i32
    %c0_i32_0 = arith.constant 0 : i32
    %c0_i32_1 = arith.constant 0 : i32
    return %c0_i32, %c0_i32_0 : i32, i32
  }
  func.func @transform_10(%arg0: i32) -> (i32, i32) {
    %c0_i32 = arith.constant 0 : i32
    %c0_i32_0 = arith.constant 0 : i32
    %c0_i32_1 = arith.constant 0 : i32
    return %c0_i32, %c0_i32_0 : i32, i32
  }
  func.func @transform_11(%arg0: i32) -> (i32, i32) {
    %c0_i32 = arith.constant 0 : i32
    %c0_i32_0 = arith.constant 0 : i32
    %c0_i32_1 = arith.constant 0 : i32
    return %c0_i32, %c0_i32_0 : i32, i32
  }
  func.func @transform_12(%arg0: i32) -> (i32, i32) {
    %c0_i32 = arith.constant 0 : i32
    %c0_i32_0 = arith.constant 0 : i32
    %c0_i32_1 = arith.constant 0 : i32
    return %c0_i32, %c0_i32_0 : i32, i32
  }
  func.func @transform_13(%arg0: i32) -> (i32, i32) {
    %c0_i32 = arith.constant 0 : i32
    %c0_i32_0 = arith.constant 0 : i32
    return %arg0, %c0_i32 : i32, i32
  }
  func.func @transform_14(%arg0: i32) -> (i32, i32) {
    %c0_i32 = arith.constant 0 : i32
    %c0_i32_0 = arith.constant 0 : i32
    return %arg0, %c0_i32 : i32, i32
  }
  func.func @transform_15(%arg0: i32) -> (i32, i32) {
    %c0_i32 = arith.constant 0 : i32
    %c0_i32_0 = arith.constant 0 : i32
    return %arg0, %c0_i32 : i32, i32
  }
  func.func @transform_16(%arg0: i32) -> (i32, i32) {
    %c0_i32 = arith.constant 0 : i32
    %c0_i32_0 = arith.constant 0 : i32
    return %arg0, %c0_i32 : i32, i32
  }
  func.func @transform_17(%arg0: i32) -> (i32, i32) {
    %c0_i32 = arith.constant 0 : i32
    %c0_i32_0 = arith.constant 0 : i32
    return %arg0, %c0_i32 : i32, i32
  }
  func.func @transform_18(%arg0: i32) -> (i32, i32) {
    %c0_i32 = arith.constant 0 : i32
    %c0_i32_0 = arith.constant 0 : i32
    return %arg0, %c0_i32 : i32, i32
  }
}

</mosaic_0001>

<llo_original>
// kernel: mnist_six_feedforward.1
$region0: #{mnist_six_feedforward.1}
  #allocation0 [shape = 'u32[]', space=smem, size = 0x4, offset = 0x4, fixed_abs, tag = 'smem constant byte address 0x4 - core index']
  #allocation1 [shape = 'u32[144,128]{1,0:T(1,128)}', space=vmem, size = 0x12000, scoped, tag = 'internal scratch']
  %s0 = inlined_call_operand.vmem [shape: bf16[8,896], index: 0, kind: input, shape index: {}]
  %s1 = inlined_call_operand.hbm [shape: bf16[896,128], index: 1, kind: input, shape index: {}]
  %s2 = inlined_call_operand.vmem [shape: f32[1,128], index: 2, kind: input, shape index: {}]
  %s3 = inlined_call_operand.vmem [shape: bf16[128,128], index: 3, kind: input, shape index: {}]
  %s4 = inlined_call_operand.vmem [shape: f32[1,128], index: 4, kind: input, shape index: {}]
  %s5 = inlined_call_operand.hbm [shape: bf16[128,128], index: 5, kind: input, shape index: {}]
  %s6 = inlined_call_operand.vmem [shape: f32[1,128], index: 6, kind: input, shape index: {}]
  %s7 = inlined_call_operand.hbm [shape: bf16[128,128], index: 7, kind: input, shape index: {}]
  %s8 = inlined_call_operand.vmem [shape: f32[1,128], index: 8, kind: input, shape index: {}]
  %s9 = inlined_call_operand.hbm [shape: bf16[128,128], index: 9, kind: input, shape index: {}]
  %s10 = inlined_call_operand.vmem [shape: f32[1,128], index: 10, kind: input, shape index: {}]
  %s11 = inlined_call_operand.hbm [shape: bf16[128,128], index: 11, kind: input, shape index: {}]
  %s12 = inlined_call_operand.vmem [shape: f32[1,128], index: 12, kind: input, shape index: {}]
  %s13 = inlined_call_operand.vmem [shape: f32[8,128], index: 13, kind: output, shape index: {0}]
  %s14 = inlined_call_operand.vmem [shape: f32[8,128], index: 14, kind: output, shape index: {1}]
  %s15 = inlined_call_operand.vmem [shape: f32[8,128], index: 15, kind: output, shape index: {2}]
  %s16 = inlined_call_operand.vmem [shape: f32[8,128], index: 16, kind: output, shape index: {3}]
  %s17 = inlined_call_operand.vmem [shape: f32[8,128], index: 17, kind: output, shape index: {4}]
  %s18 = inlined_call_operand.vmem [shape: f32[8,128], index: 18, kind: output, shape index: {5}]
  %19 = xla_tuple %s13, %s14, %s15, %s16, %s17, %s18
  %s20 = sld [smem:[#allocation0]]
  $region122: #{mnist_six_feedforward.1} parent=0
    _
  %s22 = ssub.s32 1, %s20
  %s23 = scalar_select 0, %s22, %s20
  $region1: #{mnist_six_feedforward.1} parent=0
    #allocation2 [shape = 'u8[229376]{0}', space=vmem, size = 0x38000, scoped, tag = 'input window, operand 1, single buffered']
    #allocation3 [shape = 's32[1]{0}', space=sflag, size = 0x4, scoped, tag = 'scoped memory for mnist_six_feedforward.1']
    #allocation4 [shape = 'u8[32768]{0}', space=vmem, size = 0x8000, scoped, tag = 'input window, operand 5, single buffered']
    #allocation5 [shape = 's32[1]{0}', space=sflag, size = 0x4, scoped, tag = 'scoped memory for mnist_six_feedforward.1']
    #allocation6 [shape = 'u8[32768]{0}', space=vmem, size = 0x8000, scoped, tag = 'input window, operand 7, single buffered']
    #allocation7 [shape = 'u8[32768]{0}', space=vmem, size = 0x8000, scoped, tag = 'input window, operand 9, single buffered']
    #allocation8 [shape = 's32[1]{0}', space=sflag, size = 0x4, scoped, tag = 'scoped memory for mnist_six_feedforward.1']
    #allocation9 [shape = 'u8[32768]{0}', space=vmem, size = 0x8000, scoped, tag = 'input window, operand 11, single buffered']
    %24 = vsyncpa [#allocation3], 0
    %25 = vsyncpa [#allocation5], 0
    %26 = vsyncpa [#allocation8], 0
    // Predicated region
    $region2: #{mnist_six_feedforward.1} parent=1 // pred_check
      _
    $region3: #{mnist_six_feedforward.1} parent=1 // pred_check_branch
      %28 = sbr.rel (0) target = $region5
    $region4: #{mnist_six_feedforward.1} parent=1 // pred_region
      _
    $region5: #{mnist_six_feedforward.1} parent=1 // pred_fallthru
      _
    // Predicated region
    $region6: #{mnist_six_feedforward.1} parent=1 // pred_check
      _
    $region7: #{mnist_six_feedforward.1} parent=1 // pred_check_branch
      %30 = sbr.rel (0) target = $region9
    $region8: #{mnist_six_feedforward.1} parent=1 // pred_region
      %s32 = ssub.s32 7168, 7168
      %33 = vsyncadd [#allocation3], %s32
      %s34 = sshll.u32 [#allocation2], 4
      %s35 = int_to_ptr.vmem [resolvable:$true] %s34
      %40 = dma.hbm_to_vmem [thread:$0]  %s1, 7168, %s35, [#allocation3], 64, 64, 4
    $region9: #{mnist_six_feedforward.1} parent=1 // pred_fallthru
      _
    // Predicated region
    $region10: #{mnist_six_feedforward.1} parent=1 // pred_check
      _
    $region11: #{mnist_six_feedforward.1} parent=1 // pred_check_branch
      %42 = sbr.rel (0) target = $region13
    $region12: #{mnist_six_feedforward.1} parent=1 // pred_region
      _
    $region13: #{mnist_six_feedforward.1} parent=1 // pred_fallthru
      _
    // Predicated region
    $region14: #{mnist_six_feedforward.1} parent=1 // pred_check
      _
    $region15: #{mnist_six_feedforward.1} parent=1 // pred_check_branch
      %44 = sbr.rel (0) target = $region17
    $region16: #{mnist_six_feedforward.1} parent=1 // pred_region
      _
    $region17: #{mnist_six_feedforward.1} parent=1 // pred_fallthru
      _
    // Predicated region
    $region18: #{mnist_six_feedforward.1} parent=1 // pred_check
      _
    $region19: #{mnist_six_feedforward.1} parent=1 // pred_check_branch
      %46 = sbr.rel (0) target = $region21
    $region20: #{mnist_six_feedforward.1} parent=1 // pred_region
      _
    $region21: #{mnist_six_feedforward.1} parent=1 // pred_fallthru
      _
    // Predicated region
    $region22: #{mnist_six_feedforward.1} parent=1 // pred_check
      _
    $region23: #{mnist_six_feedforward.1} parent=1 // pred_check_branch
      %48 = sbr.rel (0) target = $region25
    $region24: #{mnist_six_feedforward.1} parent=1 // pred_region
      %s50 = ssub.s32 1024, 1024
      %51 = vsyncadd [#allocation5], %s50
      %s52 = sshll.u32 [#allocation4], 4
      %s53 = int_to_ptr.vmem [resolvable:$true] %s52
      %58 = dma.hbm_to_vmem [thread:$0]  %s5, 1024, %s53, [#allocation5], 64, 64, 4
    $region25: #{mnist_six_feedforward.1} parent=1 // pred_fallthru
      _
    // Predicated region
    $region26: #{mnist_six_feedforward.1} parent=1 // pred_check
      _
    $region27: #{mnist_six_feedforward.1} parent=1 // pred_check_branch
      %60 = sbr.rel (0) target = $region29
    $region28: #{mnist_six_feedforward.1} parent=1 // pred_region
      _
    $region29: #{mnist_six_feedforward.1} parent=1 // pred_fallthru
      _
    // Predicated region
    $region30: #{mnist_six_feedforward.1} parent=1 // pred_check
      _
    $region31: #{mnist_six_feedforward.1} parent=1 // pred_check_branch
      %62 = sbr.rel (0) target = $region33
    $region32: #{mnist_six_feedforward.1} parent=1 // pred_region
      %s64 = ssub.s32 1024, 1024
      %65 = vsyncadd [#allocation5], %s64
      %s66 = sshll.u32 [#allocation6], 4
      %s67 = int_to_ptr.vmem [resolvable:$true] %s66
      %72 = dma.hbm_to_vmem [thread:$0]  %s7, 1024, %s67, [#allocation5], 64, 64, 4
    $region33: #{mnist_six_feedforward.1} parent=1 // pred_fallthru
      _
    // Predicated region
    $region34: #{mnist_six_feedforward.1} parent=1 // pred_check
      _
    $region35: #{mnist_six_feedforward.1} parent=1 // pred_check_branch
      %74 = sbr.rel (0) target = $region37
    $region36: #{mnist_six_feedforward.1} parent=1 // pred_region
      _
    $region37: #{mnist_six_feedforward.1} parent=1 // pred_fallthru
      _
    // Predicated region
    $region38: #{mnist_six_feedforward.1} parent=1 // pred_check
      _
    $region39: #{mnist_six_feedforward.1} parent=1 // pred_check_branch
      %76 = sbr.rel (0) target = $region41
    $region40: #{mnist_six_feedforward.1} parent=1 // pred_region
      %s78 = ssub.s32 1024, 1024
      %79 = vsyncadd [#allocation8], %s78
      %s80 = sshll.u32 [#allocation7], 4
      %s81 = int_to_ptr.vmem [resolvable:$true] %s80
      %86 = dma.hbm_to_vmem [thread:$0]  %s9, 1024, %s81, [#allocation8], 64, 64, 4
    $region41: #{mnist_six_feedforward.1} parent=1 // pred_fallthru
      _
    // Predicated region
    $region42: #{mnist_six_feedforward.1} parent=1 // pred_check
      _
    $region43: #{mnist_six_feedforward.1} parent=1 // pred_check_branch
      %88 = sbr.rel (0) target = $region45
    $region44: #{mnist_six_feedforward.1} parent=1 // pred_region
      _
    $region45: #{mnist_six_feedforward.1} parent=1 // pred_fallthru
      _
    // Predicated region
    $region46: #{mnist_six_feedforward.1} parent=1 // pred_check
      _
    $region47: #{mnist_six_feedforward.1} parent=1 // pred_check_branch
      %90 = sbr.rel (0) target = $region49
    $region48: #{mnist_six_feedforward.1} parent=1 // pred_region
      %s92 = ssub.s32 1024, 1024
      %93 = vsyncadd [#allocation8], %s92
      %s94 = sshll.u32 [#allocation9], 4
      %s95 = int_to_ptr.vmem [resolvable:$true] %s94
      %100 = dma.hbm_to_vmem [thread:$0]  %s11, 1024, %s95, [#allocation8], 64, 64, 4
    $region49: #{mnist_six_feedforward.1} parent=1 // pred_fallthru
      _
    // Predicated region
    $region50: #{mnist_six_feedforward.1} parent=1 // pred_check
      _
    $region51: #{mnist_six_feedforward.1} parent=1 // pred_check_branch
      %102 = sbr.rel (0) target = $region53
    $region52: #{mnist_six_feedforward.1} parent=1 // pred_region
      _
    $region53: #{mnist_six_feedforward.1} parent=1 // pred_fallthru
      _
    // Predicated region
    $region54: #{mnist_six_feedforward.1} parent=1 // pred_check
      _
    $region55: #{mnist_six_feedforward.1} parent=1 // pred_check_branch
      %104 = sbr.rel (0) target = $region57
    $region56: #{mnist_six_feedforward.1} parent=1 // pred_region
      %105 = dma.done [#allocation3], 7168
    $region57: #{mnist_six_feedforward.1} parent=1 // pred_fallthru
      _
    // Predicated region
    $region58: #{mnist_six_feedforward.1} parent=1 // pred_check
      _
    $region59: #{mnist_six_feedforward.1} parent=1 // pred_check_branch
      %107 = sbr.rel (0) target = $region61
    $region60: #{mnist_six_feedforward.1} parent=1 // pred_region
      %108 = dma.done [#allocation5], 1024
    $region61: #{mnist_six_feedforward.1} parent=1 // pred_fallthru
      _
    // Predicated region
    $region62: #{mnist_six_feedforward.1} parent=1 // pred_check
      _
    $region63: #{mnist_six_feedforward.1} parent=1 // pred_check_branch
      %110 = sbr.rel (0) target = $region65
    $region64: #{mnist_six_feedforward.1} parent=1 // pred_region
      %111 = dma.done [#allocation5], 1024
    $region65: #{mnist_six_feedforward.1} parent=1 // pred_fallthru
      _
    // Predicated region
    $region66: #{mnist_six_feedforward.1} parent=1 // pred_check
      _
    $region67: #{mnist_six_feedforward.1} parent=1 // pred_check_branch
      %113 = sbr.rel (0) target = $region69
    $region68: #{mnist_six_feedforward.1} parent=1 // pred_region
      %114 = dma.done [#allocation8], 1024
    $region69: #{mnist_six_feedforward.1} parent=1 // pred_fallthru
      _
    // Predicated region
    $region70: #{mnist_six_feedforward.1} parent=1 // pred_check
      _
    $region71: #{mnist_six_feedforward.1} parent=1 // pred_check_branch
      %116 = sbr.rel (0) target = $region73
    $region72: #{mnist_six_feedforward.1} parent=1 // pred_region
      %117 = dma.done [#allocation8], 1024
    $region73: #{mnist_six_feedforward.1} parent=1 // pred_fallthru
      _
    %v119 = vld [vmem:[%s0] sm:$0xff]
    %v120 = vld [vmem:[%s0 + $0x8] sm:$0xff]
    %v121 = vld [vmem:[%s0 + $0x10] sm:$0xff]
    %v122 = vld [vmem:[%s0 + $0x18] sm:$0xf]
    %v123 = vld [vmem:[#allocation2] sm:$0xf]
    %v124 = vld [vmem:[#allocation2 + $0x4] sm:$0xf]
    %v125 = vld [vmem:[#allocation2 + $0x8] sm:$0xf]
    %v126 = vld [vmem:[#allocation2 + $0xc] sm:$0xf]
    %v127 = vld [vmem:[#allocation2 + $0x10] sm:$0xf]
    %v128 = vld [vmem:[#allocation2 + $0x14] sm:$0xf]
    %v129 = vld [vmem:[#allocation2 + $0x18] sm:$0xf]
    %v130 = vld [vmem:[#allocation2 + $0x1c] sm:$0xf]
    %v131 = vld [vmem:[#allocation2 + $0x20] sm:$0xf]
    %v132 = vld [vmem:[#allocation2 + $0x24] sm:$0xf]
    %v133 = vld [vmem:[#allocation2 + $0x28] sm:$0xf]
    %v134 = vld [vmem:[#allocation2 + $0x2c] sm:$0xf]
    %v135 = vld [vmem:[#allocation2 + $0x30] sm:$0xf]
    %v136 = vld [vmem:[#allocation2 + $0x34] sm:$0xf]
    %v137 = vld [vmem:[#allocation2 + $0x38] sm:$0xf]
    %v138 = vld [vmem:[#allocation2 + $0x3c] sm:$0xf]
    %v139 = vld [vmem:[#allocation2 + $0x40] sm:$0xf]
    %v140 = vld [vmem:[#allocation2 + $0x44] sm:$0xf]
    %v141 = vld [vmem:[#allocation2 + $0x48] sm:$0xf]
    %v142 = vld [vmem:[#allocation2 + $0x4c] sm:$0xf]
    %v143 = vld [vmem:[#allocation2 + $0x50] sm:$0xf]
    %v144 = vld [vmem:[#allocation2 + $0x54] sm:$0xf]
    %v145 = vld [vmem:[#allocation2 + $0x58] sm:$0xf]
    %v146 = vld [vmem:[#allocation2 + $0x5c] sm:$0xf]
    %v147 = vld [vmem:[#allocation2 + $0x60] sm:$0xf]
    %v148 = vld [vmem:[#allocation2 + $0x64] sm:$0xf]
    %v149 = vld [vmem:[#allocation2 + $0x68] sm:$0xf]
    %v150 = vld [vmem:[#allocation2 + $0x6c] sm:$0xf]
    %v151 = vld [vmem:[#allocation2 + $0x70] sm:$0xf]
    %v152 = vld [vmem:[#allocation2 + $0x74] sm:$0xf]
    %v153 = vld [vmem:[#allocation2 + $0x78] sm:$0xf]
    %v154 = vld [vmem:[#allocation2 + $0x7c] sm:$0xf]
    %v155 = vld [vmem:[#allocation2 + $0x80] sm:$0xf]
    %v156 = vld [vmem:[#allocation2 + $0x84] sm:$0xf]
    %v157 = vld [vmem:[#allocation2 + $0x88] sm:$0xf]
    %v158 = vld [vmem:[#allocation2 + $0x8c] sm:$0xf]
    %v159 = vld [vmem:[#allocation2 + $0x90] sm:$0xf]
    %v160 = vld [vmem:[#allocation2 + $0x94] sm:$0xf]
    %v161 = vld [vmem:[#allocation2 + $0x98] sm:$0xf]
    %v162 = vld [vmem:[#allocation2 + $0x9c] sm:$0xf]
    %v163 = vld [vmem:[#allocation2 + $0xa0] sm:$0xf]
    %v164 = vld [vmem:[#allocation2 + $0xa4] sm:$0xf]
    %v165 = vld [vmem:[#allocation2 + $0xa8] sm:$0xf]
    %v166 = vld [vmem:[#allocation2 + $0xac] sm:$0xf]
    %v167 = vld [vmem:[#allocation2 + $0xb0] sm:$0xf]
    %v168 = vld [vmem:[#allocation2 + $0xb4] sm:$0xf]
    %v169 = vld [vmem:[#allocation2 + $0xb8] sm:$0xf]
    %v170 = vld [vmem:[#allocation2 + $0xbc] sm:$0xf]
    %v171 = vld [vmem:[#allocation2 + $0xc0] sm:$0xf]
    %v172 = vld [vmem:[#allocation2 + $0xc4] sm:$0xf]
    %v173 = vld [vmem:[#allocation2 + $0xc8] sm:$0xf]
    %v174 = vld [vmem:[#allocation2 + $0xcc] sm:$0xf]
    %v175 = vld [vmem:[#allocation2 + $0xd0] sm:$0xf]
    %v176 = vld [vmem:[#allocation2 + $0xd4] sm:$0xf]
    %v177 = vld [vmem:[#allocation2 + $0xd8] sm:$0xf]
    %v178 = vld [vmem:[#allocation2 + $0xdc] sm:$0xf]
    %v179 = vld [vmem:[#allocation2 + $0xe0] sm:$0xf]
    %v180 = vld [vmem:[#allocation2 + $0xe4] sm:$0xf]
    %v181 = vld [vmem:[#allocation2 + $0xe8] sm:$0xf]
    %v182 = vld [vmem:[#allocation2 + $0xec] sm:$0xf]
    %v183 = vld [vmem:[#allocation2 + $0xf0] sm:$0xf]
    %v184 = vld [vmem:[#allocation2 + $0xf4] sm:$0xf]
    %v185 = vld [vmem:[#allocation2 + $0xf8] sm:$0xf]
    %v186 = vld [vmem:[#allocation2 + $0xfc] sm:$0xf]
    %v187 = vld [vmem:[#allocation2 + $0x100] sm:$0xf]
    %v188 = vld [vmem:[#allocation2 + $0x104] sm:$0xf]
    %v189 = vld [vmem:[#allocation2 + $0x108] sm:$0xf]
    %v190 = vld [vmem:[#allocation2 + $0x10c] sm:$0xf]
    %v191 = vld [vmem:[#allocation2 + $0x110] sm:$0xf]
    %v192 = vld [vmem:[#allocation2 + $0x114] sm:$0xf]
    %v193 = vld [vmem:[#allocation2 + $0x118] sm:$0xf]
    %v194 = vld [vmem:[#allocation2 + $0x11c] sm:$0xf]
    %v195 = vld [vmem:[#allocation2 + $0x120] sm:$0xf]
    %v196 = vld [vmem:[#allocation2 + $0x124] sm:$0xf]
    %v197 = vld [vmem:[#allocation2 + $0x128] sm:$0xf]
    %v198 = vld [vmem:[#allocation2 + $0x12c] sm:$0xf]
    %v199 = vld [vmem:[#allocation2 + $0x130] sm:$0xf]
    %v200 = vld [vmem:[#allocation2 + $0x134] sm:$0xf]
    %v201 = vld [vmem:[#allocation2 + $0x138] sm:$0xf]
    %v202 = vld [vmem:[#allocation2 + $0x13c] sm:$0xf]
    %v203 = vld [vmem:[#allocation2 + $0x140] sm:$0xf]
    %v204 = vld [vmem:[#allocation2 + $0x144] sm:$0xf]
    %v205 = vld [vmem:[#allocation2 + $0x148] sm:$0xf]
    %v206 = vld [vmem:[#allocation2 + $0x14c] sm:$0xf]
    %v207 = vld [vmem:[#allocation2 + $0x150] sm:$0xf]
    %v208 = vld [vmem:[#allocation2 + $0x154] sm:$0xf]
    %v209 = vld [vmem:[#allocation2 + $0x158] sm:$0xf]
    %v210 = vld [vmem:[#allocation2 + $0x15c] sm:$0xf]
    %v211 = vld [vmem:[#allocation2 + $0x160] sm:$0xf]
    %v212 = vld [vmem:[#allocation2 + $0x164] sm:$0xf]
    %v213 = vld [vmem:[#allocation2 + $0x168] sm:$0xf]
    %v214 = vld [vmem:[#allocation2 + $0x16c] sm:$0xf]
    %v215 = vld [vmem:[#allocation2 + $0x170] sm:$0xf]
    %v216 = vld [vmem:[#allocation2 + $0x174] sm:$0xf]
    %v217 = vld [vmem:[#allocation2 + $0x178] sm:$0xf]
    %v218 = vld [vmem:[#allocation2 + $0x17c] sm:$0xf]
    %v219 = vld [vmem:[#allocation2 + $0x180] sm:$0xf]
    %v220 = vld [vmem:[#allocation2 + $0x184] sm:$0xf]
    %v221 = vld [vmem:[#allocation2 + $0x188] sm:$0xf]
    %v222 = vld [vmem:[#allocation2 + $0x18c] sm:$0xf]
    %v223 = vld [vmem:[#allocation2 + $0x190] sm:$0xf]
    %v224 = vld [vmem:[#allocation2 + $0x194] sm:$0xf]
    %v225 = vld [vmem:[#allocation2 + $0x198] sm:$0xf]
    %v226 = vld [vmem:[#allocation2 + $0x19c] sm:$0xf]
    %v227 = vld [vmem:[#allocation2 + $0x1a0] sm:$0xf]
    %v228 = vld [vmem:[#allocation2 + $0x1a4] sm:$0xf]
    %v229 = vld [vmem:[#allocation2 + $0x1a8] sm:$0xf]
    %v230 = vld [vmem:[#allocation2 + $0x1ac] sm:$0xf]
    %v231 = vld [vmem:[#allocation2 + $0x1b0] sm:$0xf]
    %v232 = vld [vmem:[#allocation2 + $0x1b4] sm:$0xf]
    %v233 = vld [vmem:[#allocation2 + $0x1b8] sm:$0xf]
    %v234 = vld [vmem:[#allocation2 + $0x1bc] sm:$0xf]
    %v235 = vld [vmem:[%s2] sm:$0x1]
    %v237 = vlaneseq
    %v238 = vshrl.u32 %v237, 7
    %v239 = vsub.s32 0, %v238
    %v240 = vrot.slane %v235, %v239
    %v246 = vunpack.c.l.b16 %v119
    %v247 = vunpack.c.h.b16 %v119
    %v248 = vunpack.c.l.b16 %v120
    %v249 = vunpack.c.h.b16 %v120
    %v250 = vunpack.c.l.b16 %v121
    %v251 = vunpack.c.h.b16 %v121
    %v252 = vunpack.c.l.b16 %v122
    %v253 = vpack.c.b16 %v246, %v246
    %v254 = vpack.c.b16 %v247, %v247
    %v255 = vpack.c.b16 %v248, %v248
    %v256 = vpack.c.b16 %v249, %v249
    %v257 = vpack.c.b16 %v250, %v250
    %v258 = vpack.c.b16 %v251, %v251
    %v259 = vpack.c.b16 %v252, %v252
    %v379 = vunpack.c.l.b16 %v123
    %v380 = vunpack.c.l.b16 %v124
    %v381 = vunpack.c.l.b16 %v125
    %v382 = vunpack.c.l.b16 %v126
    %v383 = vunpack.c.l.b16 %v127
    %v384 = vunpack.c.l.b16 %v128
    %v385 = vunpack.c.l.b16 %v129
    %v386 = vunpack.c.l.b16 %v130
    %v387 = vunpack.c.l.b16 %v131
    %v388 = vunpack.c.l.b16 %v132
    %v389 = vunpack.c.l.b16 %v133
    %v390 = vunpack.c.l.b16 %v134
    %v391 = vunpack.c.l.b16 %v135
    %v392 = vunpack.c.l.b16 %v136
    %v393 = vunpack.c.l.b16 %v137
    %v394 = vunpack.c.l.b16 %v138
    %v395 = vunpack.c.l.b16 %v139
    %v396 = vunpack.c.l.b16 %v140
    %v397 = vunpack.c.l.b16 %v141
    %v398 = vunpack.c.l.b16 %v142
    %v399 = vunpack.c.l.b16 %v143
    %v400 = vunpack.c.l.b16 %v144
    %v401 = vunpack.c.l.b16 %v145
    %v402 = vunpack.c.l.b16 %v146
    %v403 = vunpack.c.l.b16 %v147
    %v404 = vunpack.c.l.b16 %v148
    %v405 = vunpack.c.l.b16 %v149
    %v406 = vunpack.c.l.b16 %v150
    %v407 = vunpack.c.l.b16 %v151
    %v408 = vunpack.c.l.b16 %v152
    %v409 = vunpack.c.l.b16 %v153
    %v410 = vunpack.c.l.b16 %v154
    %v411 = vunpack.c.l.b16 %v155
    %v412 = vunpack.c.l.b16 %v156
    %v413 = vunpack.c.l.b16 %v157
    %v414 = vunpack.c.l.b16 %v158
    %v415 = vunpack.c.l.b16 %v159
    %v416 = vunpack.c.l.b16 %v160
    %v417 = vunpack.c.l.b16 %v161
    %v418 = vunpack.c.l.b16 %v162
    %v419 = vunpack.c.l.b16 %v163
    %v420 = vunpack.c.l.b16 %v164
    %v421 = vunpack.c.l.b16 %v165
    %v422 = vunpack.c.l.b16 %v166
    %v423 = vunpack.c.l.b16 %v167
    %v424 = vunpack.c.l.b16 %v168
    %v425 = vunpack.c.l.b16 %v169
    %v426 = vunpack.c.l.b16 %v170
    %v427 = vunpack.c.l.b16 %v171
    %v428 = vunpack.c.l.b16 %v172
    %v429 = vunpack.c.l.b16 %v173
    %v430 = vunpack.c.l.b16 %v174
    %v431 = vunpack.c.l.b16 %v175
    %v432 = vunpack.c.l.b16 %v176
    %v433 = vunpack.c.l.b16 %v177
    %v434 = vunpack.c.l.b16 %v178
    %v435 = vunpack.c.l.b16 %v179
    %v436 = vunpack.c.l.b16 %v180
    %v437 = vunpack.c.l.b16 %v181
    %v438 = vunpack.c.l.b16 %v182
    %v439 = vunpack.c.l.b16 %v183
    %v440 = vunpack.c.l.b16 %v184
    %v441 = vunpack.c.l.b16 %v185
    %v442 = vunpack.c.l.b16 %v186
    %v443 = vunpack.c.l.b16 %v187
    %v444 = vunpack.c.l.b16 %v188
    %v445 = vunpack.c.l.b16 %v189
    %v446 = vunpack.c.l.b16 %v190
    %v447 = vunpack.c.l.b16 %v191
    %v448 = vunpack.c.l.b16 %v192
    %v449 = vunpack.c.l.b16 %v193
    %v450 = vunpack.c.l.b16 %v194
    %v451 = vunpack.c.l.b16 %v195
    %v452 = vunpack.c.l.b16 %v196
    %v453 = vunpack.c.l.b16 %v197
    %v454 = vunpack.c.l.b16 %v198
    %v455 = vunpack.c.l.b16 %v199
    %v456 = vunpack.c.l.b16 %v200
    %v457 = vunpack.c.l.b16 %v201
    %v458 = vunpack.c.l.b16 %v202
    %v459 = vunpack.c.l.b16 %v203
    %v460 = vunpack.c.l.b16 %v204
    %v461 = vunpack.c.l.b16 %v205
    %v462 = vunpack.c.l.b16 %v206
    %v463 = vunpack.c.l.b16 %v207
    %v464 = vunpack.c.l.b16 %v208
    %v465 = vunpack.c.l.b16 %v209
    %v466 = vunpack.c.l.b16 %v210
    %v467 = vunpack.c.l.b16 %v211
    %v468 = vunpack.c.l.b16 %v212
    %v469 = vunpack.c.l.b16 %v213
    %v470 = vunpack.c.l.b16 %v214
    %v471 = vunpack.c.l.b16 %v215
    %v472 = vunpack.c.l.b16 %v216
    %v473 = vunpack.c.l.b16 %v217
    %v474 = vunpack.c.l.b16 %v218
    %v475 = vunpack.c.l.b16 %v219
    %v476 = vunpack.c.l.b16 %v220
    %v477 = vunpack.c.l.b16 %v221
    %v478 = vunpack.c.l.b16 %v222
    %v479 = vunpack.c.l.b16 %v223
    %v480 = vunpack.c.l.b16 %v224
    %v481 = vunpack.c.l.b16 %v225
    %v482 = vunpack.c.l.b16 %v226
    %v483 = vunpack.c.l.b16 %v227
    %v484 = vunpack.c.l.b16 %v228
    %v485 = vunpack.c.l.b16 %v229
    %v486 = vunpack.c.l.b16 %v230
    %v487 = vunpack.c.l.b16 %v231
    %v488 = vunpack.c.l.b16 %v232
    %v489 = vunpack.c.l.b16 %v233
    %v490 = vunpack.c.l.b16 %v234
    %v491 = vpack.c.b16 %v380, %v379
    %v492 = vpack.c.b16 %v382, %v381
    %v493 = vpack.c.b16 %v384, %v383
    %v494 = vpack.c.b16 %v386, %v385
    %v495 = vpack.c.b16 %v388, %v387
    %v496 = vpack.c.b16 %v390, %v389
    %v497 = vpack.c.b16 %v392, %v391
    %v498 = vpack.c.b16 %v394, %v393
    %v499 = vpack.c.b16 %v396, %v395
    %v500 = vpack.c.b16 %v398, %v397
    %v501 = vpack.c.b16 %v400, %v399
    %v502 = vpack.c.b16 %v402, %v401
    %v503 = vpack.c.b16 %v404, %v403
    %v504 = vpack.c.b16 %v406, %v405
    %v505 = vpack.c.b16 %v408, %v407
    %v506 = vpack.c.b16 %v410, %v409
    %v507 = vpack.c.b16 %v412, %v411
    %v508 = vpack.c.b16 %v414, %v413
    %v509 = vpack.c.b16 %v416, %v415
    %v510 = vpack.c.b16 %v418, %v417
    %v511 = vpack.c.b16 %v420, %v419
    %v512 = vpack.c.b16 %v422, %v421
    %v513 = vpack.c.b16 %v424, %v423
    %v514 = vpack.c.b16 %v426, %v425
    %v515 = vpack.c.b16 %v428, %v427
    %v516 = vpack.c.b16 %v430, %v429
    %v517 = vpack.c.b16 %v432, %v431
    %v518 = vpack.c.b16 %v434, %v433
    %v519 = vpack.c.b16 %v436, %v435
    %v520 = vpack.c.b16 %v438, %v437
    %v521 = vpack.c.b16 %v440, %v439
    %v522 = vpack.c.b16 %v442, %v441
    %v523 = vpack.c.b16 %v444, %v443
    %v524 = vpack.c.b16 %v446, %v445
    %v525 = vpack.c.b16 %v448, %v447
    %v526 = vpack.c.b16 %v450, %v449
    %v527 = vpack.c.b16 %v452, %v451
    %v528 = vpack.c.b16 %v454, %v453
    %v529 = vpack.c.b16 %v456, %v455
    %v530 = vpack.c.b16 %v458, %v457
    %v531 = vpack.c.b16 %v460, %v459
    %v532 = vpack.c.b16 %v462, %v461
    %v533 = vpack.c.b16 %v464, %v463
    %v534 = vpack.c.b16 %v466, %v465
    %v535 = vpack.c.b16 %v468, %v467
    %v536 = vpack.c.b16 %v470, %v469
    %v537 = vpack.c.b16 %v472, %v471
    %v538 = vpack.c.b16 %v474, %v473
    %v539 = vpack.c.b16 %v476, %v475
    %v540 = vpack.c.b16 %v478, %v477
    %v541 = vpack.c.b16 %v480, %v479
    %v542 = vpack.c.b16 %v482, %v481
    %v543 = vpack.c.b16 %v484, %v483
    %v544 = vpack.c.b16 %v486, %v485
    %v545 = vpack.c.b16 %v488, %v487
    %v546 = vpack.c.b16 %v490, %v489
    %603 = vmatprep.subr.bf16.mxu0 0
    %604 = vmatpush1.bf16.msra.mxu0 %v491
    %605 = vmatprep.subr.bf16.mxu0 0
    %606 = vmatpush1.bf16.msra.mxu0 %v492
    %607 = vmatprep.subr.bf16.mxu0 0
    %608 = vmatpush1.bf16.msra.mxu0 %v493
    %609 = vmatprep.subr.bf16.mxu0 0
    %610 = vmatpush1.bf16.msra.mxu0 %v494
    %611 = vmatprep.subr.bf16.mxu0 0
    %612 = vmatpush1.bf16.msra.mxu0 %v495
    %613 = vmatprep.subr.bf16.mxu0 0
    %614 = vmatpush1.bf16.msra.mxu0 %v496
    %615 = vmatprep.subr.bf16.mxu0 0
    %616 = vmatpush1.bf16.msra.mxu0 %v497
    %617 = vmatprep.subr.bf16.mxu0 0
    %618 = vmatpush1.bf16.msra.mxu0 %v498
    %619 = vmatprep.subr.bf16.mxu0 0
    %620 = vmatpush1.bf16.msra.mxu0 %v499
    %621 = vmatprep.subr.bf16.mxu0 0
    %622 = vmatpush1.bf16.msra.mxu0 %v500
    %623 = vmatprep.subr.bf16.mxu0 0
    %624 = vmatpush1.bf16.msra.mxu0 %v501
    %625 = vmatprep.subr.bf16.mxu0 0
    %626 = vmatpush1.bf16.msra.mxu0 %v502
    %627 = vmatprep.subr.bf16.mxu0 0
    %628 = vmatpush1.bf16.msra.mxu0 %v503
    %629 = vmatprep.subr.bf16.mxu0 0
    %630 = vmatpush1.bf16.msra.mxu0 %v504
    %631 = vmatprep.subr.bf16.mxu0 0
    %632 = vmatpush1.bf16.msra.mxu0 %v505
    %633 = vmatprep.subr.bf16.mxu0 0
    %634 = vmatpush1.bf16.msra.mxu0 %v506
    %635 = vmatprep.mubr.bf16.mxu0 %v254
    %636 = vmatmul.mubr.bf16.gmra.mrb[0].mxu0 %v253
    %v637 = vpop.f32.mrb[0].mxu0
    %v638 = vadd.f32 %v240, %v637
    %v639 = vpop.f32.mrb[0].mxu0
    %v640 = vpop.f32.mrb[0].mxu0
    %v641 = vpop.f32.mrb[0].mxu0
    %642 = vdwg.mxu0
    %643 = vmatprep.subr.bf16.mxu0 0
    %644 = vmatpush1.bf16.msra.mxu0 %v507
    %645 = vmatprep.subr.bf16.mxu0 0
    %646 = vmatpush1.bf16.msra.mxu0 %v508
    %647 = vmatprep.subr.bf16.mxu0 0
    %648 = vmatpush1.bf16.msra.mxu0 %v509
    %649 = vmatprep.subr.bf16.mxu0 0
    %650 = vmatpush1.bf16.msra.mxu0 %v510
    %651 = vmatprep.subr.bf16.mxu0 0
    %652 = vmatpush1.bf16.msra.mxu0 %v511
    %653 = vmatprep.subr.bf16.mxu0 0
    %654 = vmatpush1.bf16.msra.mxu0 %v512
    %655 = vmatprep.subr.bf16.mxu0 0
    %656 = vmatpush1.bf16.msra.mxu0 %v513
    %657 = vmatprep.subr.bf16.mxu0 0
    %658 = vmatpush1.bf16.msra.mxu0 %v514
    %659 = vmatprep.subr.bf16.mxu0 0
    %660 = vmatpush1.bf16.msra.mxu0 %v515
    %661 = vmatprep.subr.bf16.mxu0 0
    %662 = vmatpush1.bf16.msra.mxu0 %v516
    %663 = vmatprep.subr.bf16.mxu0 0
    %664 = vmatpush1.bf16.msra.mxu0 %v517
    %665 = vmatprep.subr.bf16.mxu0 0
    %666 = vmatpush1.bf16.msra.mxu0 %v518
    %667 = vmatprep.subr.bf16.mxu0 0
    %668 = vmatpush1.bf16.msra.mxu0 %v519
    %669 = vmatprep.subr.bf16.mxu0 0
    %670 = vmatpush1.bf16.msra.mxu0 %v520
    %671 = vmatprep.subr.bf16.mxu0 0
    %672 = vmatpush1.bf16.msra.mxu0 %v521
    %673 = vmatprep.subr.bf16.mxu0 0
    %674 = vmatpush1.bf16.msra.mxu0 %v522
    %675 = vmatprep.mubr.bf16.mxu0 %v256
    %676 = vmatmul.mubr.bf16.gmra.mrb[0].mxu0 %v255
    %v677 = vpop.f32.mrb[0].mxu0
    %v678 = vadd.f32 %v638, %v677
    %v679 = vpop.f32.mrb[0].mxu0
    %v680 = vpop.f32.mrb[0].mxu0
    %v681 = vpop.f32.mrb[0].mxu0
    %682 = vdwg.mxu0
    %683 = vmatprep.subr.bf16.mxu0 0
    %684 = vmatpush1.bf16.msra.mxu0 %v523
    %685 = vmatprep.subr.bf16.mxu0 0
    %686 = vmatpush1.bf16.msra.mxu0 %v524
    %687 = vmatprep.subr.bf16.mxu0 0
    %688 = vmatpush1.bf16.msra.mxu0 %v525
    %689 = vmatprep.subr.bf16.mxu0 0
    %690 = vmatpush1.bf16.msra.mxu0 %v526
    %691 = vmatprep.subr.bf16.mxu0 0
    %692 = vmatpush1.bf16.msra.mxu0 %v527
    %693 = vmatprep.subr.bf16.mxu0 0
    %694 = vmatpush1.bf16.msra.mxu0 %v528
    %695 = vmatprep.subr.bf16.mxu0 0
    %696 = vmatpush1.bf16.msra.mxu0 %v529
    %697 = vmatprep.subr.bf16.mxu0 0
    %698 = vmatpush1.bf16.msra.mxu0 %v530
    %699 = vmatprep.subr.bf16.mxu0 0
    %700 = vmatpush1.bf16.msra.mxu0 %v531
    %701 = vmatprep.subr.bf16.mxu0 0
    %702 = vmatpush1.bf16.msra.mxu0 %v532
    %703 = vmatprep.subr.bf16.mxu0 0
    %704 = vmatpush1.bf16.msra.mxu0 %v533
    %705 = vmatprep.subr.bf16.mxu0 0
    %706 = vmatpush1.bf16.msra.mxu0 %v534
    %707 = vmatprep.subr.bf16.mxu0 0
    %708 = vmatpush1.bf16.msra.mxu0 %v535
    %709 = vmatprep.subr.bf16.mxu0 0
    %710 = vmatpush1.bf16.msra.mxu0 %v536
    %711 = vmatprep.subr.bf16.mxu0 0
    %712 = vmatpush1.bf16.msra.mxu0 %v537
    %713 = vmatprep.subr.bf16.mxu0 0
    %714 = vmatpush1.bf16.msra.mxu0 %v538
    %715 = vmatprep.mubr.bf16.mxu0 %v258
    %716 = vmatmul.mubr.bf16.gmra.mrb[0].mxu0 %v257
    %v717 = vpop.f32.mrb[0].mxu0
    %v718 = vadd.f32 %v678, %v717
    %v719 = vpop.f32.mrb[0].mxu0
    %v720 = vpop.f32.mrb[0].mxu0
    %v721 = vpop.f32.mrb[0].mxu0
    %722 = vdwg.mxu0
    %723 = vmatprep.subr.bf16.mxu0 0
    %724 = vmatpush1.bf16.msra.mxu0 %v539
    %725 = vmatprep.subr.bf16.mxu0 0
    %726 = vmatpush1.bf16.msra.mxu0 %v540
    %727 = vmatprep.subr.bf16.mxu0 0
    %728 = vmatpush1.bf16.msra.mxu0 %v541
    %729 = vmatprep.subr.bf16.mxu0 0
    %730 = vmatpush1.bf16.msra.mxu0 %v542
    %731 = vmatprep.subr.bf16.mxu0 0
    %732 = vmatpush1.bf16.msra.mxu0 %v543
    %733 = vmatprep.subr.bf16.mxu0 0
    %734 = vmatpush1.bf16.msra.mxu0 %v544
    %735 = vmatprep.subr.bf16.mxu0 0
    %736 = vmatpush1.bf16.msra.mxu0 %v545
    %737 = vmatprep.subr.bf16.mxu0 0
    %738 = vmatpush1.bf16.msra.mxu0 %v546
    %739 = vmatprep.subr.bf16.mxu0 0
    %740 = vmatpush1.bf16.msra.mxu0 0
    %741 = vmatprep.subr.bf16.mxu0 0
    %742 = vmatpush1.bf16.msra.mxu0 0
    %743 = vmatprep.subr.bf16.mxu0 0
    %744 = vmatpush1.bf16.msra.mxu0 0
    %745 = vmatprep.subr.bf16.mxu0 0
    %746 = vmatpush1.bf16.msra.mxu0 0
    %747 = vmatprep.subr.bf16.mxu0 0
    %748 = vmatpush1.bf16.msra.mxu0 0
    %749 = vmatprep.subr.bf16.mxu0 0
    %750 = vmatpush1.bf16.msra.mxu0 0
    %751 = vmatprep.subr.bf16.mxu0 0
    %752 = vmatpush1.bf16.msra.mxu0 0
    %753 = vmatprep.subr.bf16.mxu0 0
    %754 = vmatpush1.bf16.msra.mxu0 0
    %755 = vmatprep.mubr.bf16.mxu0 0
    %756 = vmatmul.mubr.bf16.gmra.mrb[0].mxu0 %v259
    %v757 = vpop.f32.mrb[0].mxu0
    %v758 = vadd.f32 %v718, %v757
    %v759 = vpop.f32.mrb[0].mxu0
    %v760 = vpop.f32.mrb[0].mxu0
    %v761 = vpop.f32.mrb[0].mxu0
    %762 = vdwg.mxu0
    %763 = vst [vmem:[%s14] sm:$0xff] %v758
    %v764 = vmax.f32 %v758, 0.0
    %v765 = vpack.c.bf16 %v764, %v764
    %v766 = vld [vmem:[%s3] sm:$0xf]
    %v767 = vld [vmem:[%s3 + $0x4] sm:$0xf]
    %v768 = vld [vmem:[%s3 + $0x8] sm:$0xf]
    %v769 = vld [vmem:[%s3 + $0xc] sm:$0xf]
    %v770 = vld [vmem:[%s3 + $0x10] sm:$0xf]
    %v771 = vld [vmem:[%s3 + $0x14] sm:$0xf]
    %v772 = vld [vmem:[%s3 + $0x18] sm:$0xf]
    %v773 = vld [vmem:[%s3 + $0x1c] sm:$0xf]
    %v774 = vld [vmem:[%s3 + $0x20] sm:$0xf]
    %v775 = vld [vmem:[%s3 + $0x24] sm:$0xf]
    %v776 = vld [vmem:[%s3 + $0x28] sm:$0xf]
    %v777 = vld [vmem:[%s3 + $0x2c] sm:$0xf]
    %v778 = vld [vmem:[%s3 + $0x30] sm:$0xf]
    %v779 = vld [vmem:[%s3 + $0x34] sm:$0xf]
    %v780 = vld [vmem:[%s3 + $0x38] sm:$0xf]
    %v781 = vld [vmem:[%s3 + $0x3c] sm:$0xf]
    %v782 = vld [vmem:[%s4] sm:$0x1]
    %v784 = vlaneseq
    %v785 = vshrl.u32 %v784, 7
    %v786 = vsub.s32 0, %v785
    %v787 = vrot.slane %v782, %v786
    %v805 = vunpack.c.l.b16 %v766
    %v806 = vunpack.c.l.b16 %v767
    %v807 = vunpack.c.l.b16 %v768
    %v808 = vunpack.c.l.b16 %v769
    %v809 = vunpack.c.l.b16 %v770
    %v810 = vunpack.c.l.b16 %v771
    %v811 = vunpack.c.l.b16 %v772
    %v812 = vunpack.c.l.b16 %v773
    %v813 = vunpack.c.l.b16 %v774
    %v814 = vunpack.c.l.b16 %v775
    %v815 = vunpack.c.l.b16 %v776
    %v816 = vunpack.c.l.b16 %v777
    %v817 = vunpack.c.l.b16 %v778
    %v818 = vunpack.c.l.b16 %v779
    %v819 = vunpack.c.l.b16 %v780
    %v820 = vunpack.c.l.b16 %v781
    %v821 = vpack.c.b16 %v806, %v805
    %v822 = vpack.c.b16 %v808, %v807
    %v823 = vpack.c.b16 %v810, %v809
    %v824 = vpack.c.b16 %v812, %v811
    %v825 = vpack.c.b16 %v814, %v813
    %v826 = vpack.c.b16 %v816, %v815
    %v827 = vpack.c.b16 %v818, %v817
    %v828 = vpack.c.b16 %v820, %v819
    %837 = vmatprep.subr.bf16.mxu0 0
    %838 = vmatpush1.bf16.msra.mxu0 %v821
    %839 = vmatprep.subr.bf16.mxu0 0
    %840 = vmatpush1.bf16.msra.mxu0 %v822
    %841 = vmatprep.subr.bf16.mxu0 0
    %842 = vmatpush1.bf16.msra.mxu0 %v823
    %843 = vmatprep.subr.bf16.mxu0 0
    %844 = vmatpush1.bf16.msra.mxu0 %v824
    %845 = vmatprep.subr.bf16.mxu0 0
    %846 = vmatpush1.bf16.msra.mxu0 %v825
    %847 = vmatprep.subr.bf16.mxu0 0
    %848 = vmatpush1.bf16.msra.mxu0 %v826
    %849 = vmatprep.subr.bf16.mxu0 0
    %850 = vmatpush1.bf16.msra.mxu0 %v827
    %851 = vmatprep.subr.bf16.mxu0 0
    %852 = vmatpush1.bf16.msra.mxu0 %v828
    %853 = vmatprep.subr.bf16.mxu0 0
    %854 = vmatpush1.bf16.msra.mxu0 0
    %855 = vmatprep.subr.bf16.mxu0 0
    %856 = vmatpush1.bf16.msra.mxu0 0
    %857 = vmatprep.subr.bf16.mxu0 0
    %858 = vmatpush1.bf16.msra.mxu0 0
    %859 = vmatprep.subr.bf16.mxu0 0
    %860 = vmatpush1.bf16.msra.mxu0 0
    %861 = vmatprep.subr.bf16.mxu0 0
    %862 = vmatpush1.bf16.msra.mxu0 0
    %863 = vmatprep.subr.bf16.mxu0 0
    %864 = vmatpush1.bf16.msra.mxu0 0
    %865 = vmatprep.subr.bf16.mxu0 0
    %866 = vmatpush1.bf16.msra.mxu0 0
    %867 = vmatprep.subr.bf16.mxu0 0
    %868 = vmatpush1.bf16.msra.mxu0 0
    %869 = vmatprep.mubr.bf16.mxu0 0
    %870 = vmatmul.mubr.bf16.gmra.mrb[0].mxu0 %v765
    %v871 = vpop.f32.mrb[0].mxu0
    %v872 = vadd.f32 %v787, %v871
    %v873 = vpop.f32.mrb[0].mxu0
    %v874 = vpop.f32.mrb[0].mxu0
    %v875 = vpop.f32.mrb[0].mxu0
    %876 = vdwg.mxu0
    %877 = vst [vmem:[%s15] sm:$0xff] %v872
    %v878 = vmax.f32 %v872, 0.0
    %v879 = vpack.c.bf16 %v878, %v878
    %v880 = vld [vmem:[#allocation4] sm:$0xf]
    %v881 = vld [vmem:[#allocation4 + $0x4] sm:$0xf]
    %v882 = vld [vmem:[#allocation4 + $0x8] sm:$0xf]
    %v883 = vld [vmem:[#allocation4 + $0xc] sm:$0xf]
    %v884 = vld [vmem:[#allocation4 + $0x10] sm:$0xf]
    %v885 = vld [vmem:[#allocation4 + $0x14] sm:$0xf]
    %v886 = vld [vmem:[#allocation4 + $0x18] sm:$0xf]
    %v887 = vld [vmem:[#allocation4 + $0x1c] sm:$0xf]
    %v888 = vld [vmem:[#allocation4 + $0x20] sm:$0xf]
    %v889 = vld [vmem:[#allocation4 + $0x24] sm:$0xf]
    %v890 = vld [vmem:[#allocation4 + $0x28] sm:$0xf]
    %v891 = vld [vmem:[#allocation4 + $0x2c] sm:$0xf]
    %v892 = vld [vmem:[#allocation4 + $0x30] sm:$0xf]
    %v893 = vld [vmem:[#allocation4 + $0x34] sm:$0xf]
    %v894 = vld [vmem:[#allocation4 + $0x38] sm:$0xf]
    %v895 = vld [vmem:[#allocation4 + $0x3c] sm:$0xf]
    %v896 = vld [vmem:[%s6] sm:$0x1]
    %v898 = vlaneseq
    %v899 = vshrl.u32 %v898, 7
    %v900 = vsub.s32 0, %v899
    %v901 = vrot.slane %v896, %v900
    %v919 = vunpack.c.l.b16 %v880
    %v920 = vunpack.c.l.b16 %v881
    %v921 = vunpack.c.l.b16 %v882
    %v922 = vunpack.c.l.b16 %v883
    %v923 = vunpack.c.l.b16 %v884
    %v924 = vunpack.c.l.b16 %v885
    %v925 = vunpack.c.l.b16 %v886
    %v926 = vunpack.c.l.b16 %v887
    %v927 = vunpack.c.l.b16 %v888
    %v928 = vunpack.c.l.b16 %v889
    %v929 = vunpack.c.l.b16 %v890
    %v930 = vunpack.c.l.b16 %v891
    %v931 = vunpack.c.l.b16 %v892
    %v932 = vunpack.c.l.b16 %v893
    %v933 = vunpack.c.l.b16 %v894
    %v934 = vunpack.c.l.b16 %v895
    %v935 = vpack.c.b16 %v920, %v919
    %v936 = vpack.c.b16 %v922, %v921
    %v937 = vpack.c.b16 %v924, %v923
    %v938 = vpack.c.b16 %v926, %v925
    %v939 = vpack.c.b16 %v928, %v927
    %v940 = vpack.c.b16 %v930, %v929
    %v941 = vpack.c.b16 %v932, %v931
    %v942 = vpack.c.b16 %v934, %v933
    %951 = vmatprep.subr.bf16.mxu0 0
    %952 = vmatpush1.bf16.msra.mxu0 %v935
    %953 = vmatprep.subr.bf16.mxu0 0
    %954 = vmatpush1.bf16.msra.mxu0 %v936
    %955 = vmatprep.subr.bf16.mxu0 0
    %956 = vmatpush1.bf16.msra.mxu0 %v937
    %957 = vmatprep.subr.bf16.mxu0 0
    %958 = vmatpush1.bf16.msra.mxu0 %v938
    %959 = vmatprep.subr.bf16.mxu0 0
    %960 = vmatpush1.bf16.msra.mxu0 %v939
    %961 = vmatprep.subr.bf16.mxu0 0
    %962 = vmatpush1.bf16.msra.mxu0 %v940
    %963 = vmatprep.subr.bf16.mxu0 0
    %964 = vmatpush1.bf16.msra.mxu0 %v941
    %965 = vmatprep.subr.bf16.mxu0 0
    %966 = vmatpush1.bf16.msra.mxu0 %v942
    %967 = vmatprep.subr.bf16.mxu0 0
    %968 = vmatpush1.bf16.msra.mxu0 0
    %969 = vmatprep.subr.bf16.mxu0 0
    %970 = vmatpush1.bf16.msra.mxu0 0
    %971 = vmatprep.subr.bf16.mxu0 0
    %972 = vmatpush1.bf16.msra.mxu0 0
    %973 = vmatprep.subr.bf16.mxu0 0
    %974 = vmatpush1.bf16.msra.mxu0 0
    %975 = vmatprep.subr.bf16.mxu0 0
    %976 = vmatpush1.bf16.msra.mxu0 0
    %977 = vmatprep.subr.bf16.mxu0 0
    %978 = vmatpush1.bf16.msra.mxu0 0
    %979 = vmatprep.subr.bf16.mxu0 0
    %980 = vmatpush1.bf16.msra.mxu0 0
    %981 = vmatprep.subr.bf16.mxu0 0
    %982 = vmatpush1.bf16.msra.mxu0 0
    %983 = vmatprep.mubr.bf16.mxu0 0
    %984 = vmatmul.mubr.bf16.gmra.mrb[0].mxu0 %v879
    %v985 = vpop.f32.mrb[0].mxu0
    %v986 = vadd.f32 %v901, %v985
    %v987 = vpop.f32.mrb[0].mxu0
    %v988 = vpop.f32.mrb[0].mxu0
    %v989 = vpop.f32.mrb[0].mxu0
    %990 = vdwg.mxu0
    %991 = vst [vmem:[%s16] sm:$0xff] %v986
    %v992 = vmax.f32 %v986, 0.0
    %v993 = vpack.c.bf16 %v992, %v992
    %v994 = vld [vmem:[#allocation6] sm:$0xf]
    %v995 = vld [vmem:[#allocation6 + $0x4] sm:$0xf]
    %v996 = vld [vmem:[#allocation6 + $0x8] sm:$0xf]
    %v997 = vld [vmem:[#allocation6 + $0xc] sm:$0xf]
    %v998 = vld [vmem:[#allocation6 + $0x10] sm:$0xf]
    %v999 = vld [vmem:[#allocation6 + $0x14] sm:$0xf]
    %v1000 = vld [vmem:[#allocation6 + $0x18] sm:$0xf]
    %v1001 = vld [vmem:[#allocation6 + $0x1c] sm:$0xf]
    %v1002 = vld [vmem:[#allocation6 + $0x20] sm:$0xf]
    %v1003 = vld [vmem:[#allocation6 + $0x24] sm:$0xf]
    %v1004 = vld [vmem:[#allocation6 + $0x28] sm:$0xf]
    %v1005 = vld [vmem:[#allocation6 + $0x2c] sm:$0xf]
    %v1006 = vld [vmem:[#allocation6 + $0x30] sm:$0xf]
    %v1007 = vld [vmem:[#allocation6 + $0x34] sm:$0xf]
    %v1008 = vld [vmem:[#allocation6 + $0x38] sm:$0xf]
    %v1009 = vld [vmem:[#allocation6 + $0x3c] sm:$0xf]
    %v1010 = vld [vmem:[%s8] sm:$0x1]
    %v1012 = vlaneseq
    %v1013 = vshrl.u32 %v1012, 7
    %v1014 = vsub.s32 0, %v1013
    %v1015 = vrot.slane %v1010, %v1014
    %v1033 = vunpack.c.l.b16 %v994
    %v1034 = vunpack.c.l.b16 %v995
    %v1035 = vunpack.c.l.b16 %v996
    %v1036 = vunpack.c.l.b16 %v997
    %v1037 = vunpack.c.l.b16 %v998
    %v1038 = vunpack.c.l.b16 %v999
    %v1039 = vunpack.c.l.b16 %v1000
    %v1040 = vunpack.c.l.b16 %v1001
    %v1041 = vunpack.c.l.b16 %v1002
    %v1042 = vunpack.c.l.b16 %v1003
    %v1043 = vunpack.c.l.b16 %v1004
    %v1044 = vunpack.c.l.b16 %v1005
    %v1045 = vunpack.c.l.b16 %v1006
    %v1046 = vunpack.c.l.b16 %v1007
    %v1047 = vunpack.c.l.b16 %v1008
    %v1048 = vunpack.c.l.b16 %v1009
    %v1049 = vpack.c.b16 %v1034, %v1033
    %v1050 = vpack.c.b16 %v1036, %v1035
    %v1051 = vpack.c.b16 %v1038, %v1037
    %v1052 = vpack.c.b16 %v1040, %v1039
    %v1053 = vpack.c.b16 %v1042, %v1041
    %v1054 = vpack.c.b16 %v1044, %v1043
    %v1055 = vpack.c.b16 %v1046, %v1045
    %v1056 = vpack.c.b16 %v1048, %v1047
    %1065 = vmatprep.subr.bf16.mxu0 0
    %1066 = vmatpush1.bf16.msra.mxu0 %v1049
    %1067 = vmatprep.subr.bf16.mxu0 0
    %1068 = vmatpush1.bf16.msra.mxu0 %v1050
    %1069 = vmatprep.subr.bf16.mxu0 0
    %1070 = vmatpush1.bf16.msra.mxu0 %v1051
    %1071 = vmatprep.subr.bf16.mxu0 0
    %1072 = vmatpush1.bf16.msra.mxu0 %v1052
    %1073 = vmatprep.subr.bf16.mxu0 0
    %1074 = vmatpush1.bf16.msra.mxu0 %v1053
    %1075 = vmatprep.subr.bf16.mxu0 0
    %1076 = vmatpush1.bf16.msra.mxu0 %v1054
    %1077 = vmatprep.subr.bf16.mxu0 0
    %1078 = vmatpush1.bf16.msra.mxu0 %v1055
    %1079 = vmatprep.subr.bf16.mxu0 0
    %1080 = vmatpush1.bf16.msra.mxu0 %v1056
    %1081 = vmatprep.subr.bf16.mxu0 0
    %1082 = vmatpush1.bf16.msra.mxu0 0
    %1083 = vmatprep.subr.bf16.mxu0 0
    %1084 = vmatpush1.bf16.msra.mxu0 0
    %1085 = vmatprep.subr.bf16.mxu0 0
    %1086 = vmatpush1.bf16.msra.mxu0 0
    %1087 = vmatprep.subr.bf16.mxu0 0
    %1088 = vmatpush1.bf16.msra.mxu0 0
    %1089 = vmatprep.subr.bf16.mxu0 0
    %1090 = vmatpush1.bf16.msra.mxu0 0
    %1091 = vmatprep.subr.bf16.mxu0 0
    %1092 = vmatpush1.bf16.msra.mxu0 0
    %1093 = vmatprep.subr.bf16.mxu0 0
    %1094 = vmatpush1.bf16.msra.mxu0 0
    %1095 = vmatprep.subr.bf16.mxu0 0
    %1096 = vmatpush1.bf16.msra.mxu0 0
    %1097 = vmatprep.mubr.bf16.mxu0 0
    %1098 = vmatmul.mubr.bf16.gmra.mrb[0].mxu0 %v993
    %v1099 = vpop.f32.mrb[0].mxu0
    %v1100 = vadd.f32 %v1015, %v1099
    %v1101 = vpop.f32.mrb[0].mxu0
    %v1102 = vpop.f32.mrb[0].mxu0
    %v1103 = vpop.f32.mrb[0].mxu0
    %1104 = vdwg.mxu0
    %1105 = vst [vmem:[%s17] sm:$0xff] %v1100
    %v1106 = vmax.f32 %v1100, 0.0
    %v1107 = vpack.c.bf16 %v1106, %v1106
    %v1108 = vld [vmem:[#allocation7] sm:$0xf]
    %v1109 = vld [vmem:[#allocation7 + $0x4] sm:$0xf]
    %v1110 = vld [vmem:[#allocation7 + $0x8] sm:$0xf]
    %v1111 = vld [vmem:[#allocation7 + $0xc] sm:$0xf]
    %v1112 = vld [vmem:[#allocation7 + $0x10] sm:$0xf]
    %v1113 = vld [vmem:[#allocation7 + $0x14] sm:$0xf]
    %v1114 = vld [vmem:[#allocation7 + $0x18] sm:$0xf]
    %v1115 = vld [vmem:[#allocation7 + $0x1c] sm:$0xf]
    %v1116 = vld [vmem:[#allocation7 + $0x20] sm:$0xf]
    %v1117 = vld [vmem:[#allocation7 + $0x24] sm:$0xf]
    %v1118 = vld [vmem:[#allocation7 + $0x28] sm:$0xf]
    %v1119 = vld [vmem:[#allocation7 + $0x2c] sm:$0xf]
    %v1120 = vld [vmem:[#allocation7 + $0x30] sm:$0xf]
    %v1121 = vld [vmem:[#allocation7 + $0x34] sm:$0xf]
    %v1122 = vld [vmem:[#allocation7 + $0x38] sm:$0xf]
    %v1123 = vld [vmem:[#allocation7 + $0x3c] sm:$0xf]
    %v1124 = vld [vmem:[%s10] sm:$0x1]
    %v1126 = vlaneseq
    %v1127 = vshrl.u32 %v1126, 7
    %v1128 = vsub.s32 0, %v1127
    %v1129 = vrot.slane %v1124, %v1128
    %v1147 = vunpack.c.l.b16 %v1108
    %v1148 = vunpack.c.l.b16 %v1109
    %v1149 = vunpack.c.l.b16 %v1110
    %v1150 = vunpack.c.l.b16 %v1111
    %v1151 = vunpack.c.l.b16 %v1112
    %v1152 = vunpack.c.l.b16 %v1113
    %v1153 = vunpack.c.l.b16 %v1114
    %v1154 = vunpack.c.l.b16 %v1115
    %v1155 = vunpack.c.l.b16 %v1116
    %v1156 = vunpack.c.l.b16 %v1117
    %v1157 = vunpack.c.l.b16 %v1118
    %v1158 = vunpack.c.l.b16 %v1119
    %v1159 = vunpack.c.l.b16 %v1120
    %v1160 = vunpack.c.l.b16 %v1121
    %v1161 = vunpack.c.l.b16 %v1122
    %v1162 = vunpack.c.l.b16 %v1123
    %v1163 = vpack.c.b16 %v1148, %v1147
    %v1164 = vpack.c.b16 %v1150, %v1149
    %v1165 = vpack.c.b16 %v1152, %v1151
    %v1166 = vpack.c.b16 %v1154, %v1153
    %v1167 = vpack.c.b16 %v1156, %v1155
    %v1168 = vpack.c.b16 %v1158, %v1157
    %v1169 = vpack.c.b16 %v1160, %v1159
    %v1170 = vpack.c.b16 %v1162, %v1161
    %1179 = vmatprep.subr.bf16.mxu0 0
    %1180 = vmatpush1.bf16.msra.mxu0 %v1163
    %1181 = vmatprep.subr.bf16.mxu0 0
    %1182 = vmatpush1.bf16.msra.mxu0 %v1164
    %1183 = vmatprep.subr.bf16.mxu0 0
    %1184 = vmatpush1.bf16.msra.mxu0 %v1165
    %1185 = vmatprep.subr.bf16.mxu0 0
    %1186 = vmatpush1.bf16.msra.mxu0 %v1166
    %1187 = vmatprep.subr.bf16.mxu0 0
    %1188 = vmatpush1.bf16.msra.mxu0 %v1167
    %1189 = vmatprep.subr.bf16.mxu0 0
    %1190 = vmatpush1.bf16.msra.mxu0 %v1168
    %1191 = vmatprep.subr.bf16.mxu0 0
    %1192 = vmatpush1.bf16.msra.mxu0 %v1169
    %1193 = vmatprep.subr.bf16.mxu0 0
    %1194 = vmatpush1.bf16.msra.mxu0 %v1170
    %1195 = vmatprep.subr.bf16.mxu0 0
    %1196 = vmatpush1.bf16.msra.mxu0 0
    %1197 = vmatprep.subr.bf16.mxu0 0
    %1198 = vmatpush1.bf16.msra.mxu0 0
    %1199 = vmatprep.subr.bf16.mxu0 0
    %1200 = vmatpush1.bf16.msra.mxu0 0
    %1201 = vmatprep.subr.bf16.mxu0 0
    %1202 = vmatpush1.bf16.msra.mxu0 0
    %1203 = vmatprep.subr.bf16.mxu0 0
    %1204 = vmatpush1.bf16.msra.mxu0 0
    %1205 = vmatprep.subr.bf16.mxu0 0
    %1206 = vmatpush1.bf16.msra.mxu0 0
    %1207 = vmatprep.subr.bf16.mxu0 0
    %1208 = vmatpush1.bf16.msra.mxu0 0
    %1209 = vmatprep.subr.bf16.mxu0 0
    %1210 = vmatpush1.bf16.msra.mxu0 0
    %1211 = vmatprep.mubr.bf16.mxu0 0
    %1212 = vmatmul.mubr.bf16.gmra.mrb[0].mxu0 %v1107
    %v1213 = vpop.f32.mrb[0].mxu0
    %v1214 = vadd.f32 %v1129, %v1213
    %v1215 = vpop.f32.mrb[0].mxu0
    %v1216 = vpop.f32.mrb[0].mxu0
    %v1217 = vpop.f32.mrb[0].mxu0
    %1218 = vdwg.mxu0
    %1219 = vst [vmem:[%s18] sm:$0xff] %v1214
    %v1220 = vmax.f32 %v1214, 0.0
    %v1221 = vpack.c.bf16 %v1220, %v1220
    %v1222 = vld [vmem:[#allocation9] sm:$0xf]
    %v1223 = vld [vmem:[#allocation9 + $0x4] sm:$0xf]
    %v1224 = vld [vmem:[#allocation9 + $0x8] sm:$0xf]
    %v1225 = vld [vmem:[#allocation9 + $0xc] sm:$0xf]
    %v1226 = vld [vmem:[#allocation9 + $0x10] sm:$0xf]
    %v1227 = vld [vmem:[#allocation9 + $0x14] sm:$0xf]
    %v1228 = vld [vmem:[#allocation9 + $0x18] sm:$0xf]
    %v1229 = vld [vmem:[#allocation9 + $0x1c] sm:$0xf]
    %v1230 = vld [vmem:[#allocation9 + $0x20] sm:$0xf]
    %v1231 = vld [vmem:[#allocation9 + $0x24] sm:$0xf]
    %v1232 = vld [vmem:[#allocation9 + $0x28] sm:$0xf]
    %v1233 = vld [vmem:[#allocation9 + $0x2c] sm:$0xf]
    %v1234 = vld [vmem:[#allocation9 + $0x30] sm:$0xf]
    %v1235 = vld [vmem:[#allocation9 + $0x34] sm:$0xf]
    %v1236 = vld [vmem:[#allocation9 + $0x38] sm:$0xf]
    %v1237 = vld [vmem:[#allocation9 + $0x3c] sm:$0xf]
    %v1238 = vld [vmem:[%s12] sm:$0x1]
    %v1240 = vlaneseq
    %v1241 = vshrl.u32 %v1240, 7
    %v1242 = vsub.s32 0, %v1241
    %v1243 = vrot.slane %v1238, %v1242
    %v1261 = vunpack.c.l.b16 %v1222
    %v1262 = vunpack.c.l.b16 %v1223
    %v1263 = vunpack.c.l.b16 %v1224
    %v1264 = vunpack.c.l.b16 %v1225
    %v1265 = vunpack.c.l.b16 %v1226
    %v1266 = vunpack.c.l.b16 %v1227
    %v1267 = vunpack.c.l.b16 %v1228
    %v1268 = vunpack.c.l.b16 %v1229
    %v1269 = vunpack.c.l.b16 %v1230
    %v1270 = vunpack.c.l.b16 %v1231
    %v1271 = vunpack.c.l.b16 %v1232
    %v1272 = vunpack.c.l.b16 %v1233
    %v1273 = vunpack.c.l.b16 %v1234
    %v1274 = vunpack.c.l.b16 %v1235
    %v1275 = vunpack.c.l.b16 %v1236
    %v1276 = vunpack.c.l.b16 %v1237
    %v1277 = vpack.c.b16 %v1262, %v1261
    %v1278 = vpack.c.b16 %v1264, %v1263
    %v1279 = vpack.c.b16 %v1266, %v1265
    %v1280 = vpack.c.b16 %v1268, %v1267
    %v1281 = vpack.c.b16 %v1270, %v1269
    %v1282 = vpack.c.b16 %v1272, %v1271
    %v1283 = vpack.c.b16 %v1274, %v1273
    %v1284 = vpack.c.b16 %v1276, %v1275
    %1293 = vmatprep.subr.bf16.mxu0 0
    %1294 = vmatpush1.bf16.msra.mxu0 %v1277
    %1295 = vmatprep.subr.bf16.mxu0 0
    %1296 = vmatpush1.bf16.msra.mxu0 %v1278
    %1297 = vmatprep.subr.bf16.mxu0 0
    %1298 = vmatpush1.bf16.msra.mxu0 %v1279
    %1299 = vmatprep.subr.bf16.mxu0 0
    %1300 = vmatpush1.bf16.msra.mxu0 %v1280
    %1301 = vmatprep.subr.bf16.mxu0 0
    %1302 = vmatpush1.bf16.msra.mxu0 %v1281
    %1303 = vmatprep.subr.bf16.mxu0 0
    %1304 = vmatpush1.bf16.msra.mxu0 %v1282
    %1305 = vmatprep.subr.bf16.mxu0 0
    %1306 = vmatpush1.bf16.msra.mxu0 %v1283
    %1307 = vmatprep.subr.bf16.mxu0 0
    %1308 = vmatpush1.bf16.msra.mxu0 %v1284
    %1309 = vmatprep.subr.bf16.mxu0 0
    %1310 = vmatpush1.bf16.msra.mxu0 0
    %1311 = vmatprep.subr.bf16.mxu0 0
    %1312 = vmatpush1.bf16.msra.mxu0 0
    %1313 = vmatprep.subr.bf16.mxu0 0
    %1314 = vmatpush1.bf16.msra.mxu0 0
    %1315 = vmatprep.subr.bf16.mxu0 0
    %1316 = vmatpush1.bf16.msra.mxu0 0
    %1317 = vmatprep.subr.bf16.mxu0 0
    %1318 = vmatpush1.bf16.msra.mxu0 0
    %1319 = vmatprep.subr.bf16.mxu0 0
    %1320 = vmatpush1.bf16.msra.mxu0 0
    %1321 = vmatprep.subr.bf16.mxu0 0
    %1322 = vmatpush1.bf16.msra.mxu0 0
    %1323 = vmatprep.subr.bf16.mxu0 0
    %1324 = vmatpush1.bf16.msra.mxu0 0
    %1325 = vmatprep.mubr.bf16.mxu0 0
    %1326 = vmatmul.mubr.bf16.gmra.mrb[0].mxu0 %v1221
    %v1327 = vpop.f32.mrb[0].mxu0
    %v1328 = vadd.f32 %v1243, %v1327
    %v1329 = vpop.f32.mrb[0].mxu0
    %v1330 = vpop.f32.mrb[0].mxu0
    %v1331 = vpop.f32.mrb[0].mxu0
    %1332 = vdwg.mxu0
    %1333 = vst [vmem:[%s13] sm:$0xff] %v1328
    // Predicated region
    $region74: #{mnist_six_feedforward.1} parent=1 // pred_check
      _
    $region75: #{mnist_six_feedforward.1} parent=1 // pred_check_branch
      %1335 = sbr.rel (0) target = $region77
    $region76: #{mnist_six_feedforward.1} parent=1 // pred_region
      _
    $region77: #{mnist_six_feedforward.1} parent=1 // pred_fallthru
      _
    // Predicated region
    $region78: #{mnist_six_feedforward.1} parent=1 // pred_check
      _
    $region79: #{mnist_six_feedforward.1} parent=1 // pred_check_branch
      %1337 = sbr.rel (0) target = $region81
    $region80: #{mnist_six_feedforward.1} parent=1 // pred_region
      _
    $region81: #{mnist_six_feedforward.1} parent=1 // pred_fallthru
      _
    // Predicated region
    $region82: #{mnist_six_feedforward.1} parent=1 // pred_check
      _
    $region83: #{mnist_six_feedforward.1} parent=1 // pred_check_branch
      %1339 = sbr.rel (0) target = $region85
    $region84: #{mnist_six_feedforward.1} parent=1 // pred_region
      _
    $region85: #{mnist_six_feedforward.1} parent=1 // pred_fallthru
      _
    // Predicated region
    $region86: #{mnist_six_feedforward.1} parent=1 // pred_check
      _
    $region87: #{mnist_six_feedforward.1} parent=1 // pred_check_branch
      %1341 = sbr.rel (0) target = $region89
    $region88: #{mnist_six_feedforward.1} parent=1 // pred_region
      _
    $region89: #{mnist_six_feedforward.1} parent=1 // pred_fallthru
      _
    // Predicated region
    $region90: #{mnist_six_feedforward.1} parent=1 // pred_check
      _
    $region91: #{mnist_six_feedforward.1} parent=1 // pred_check_branch
      %1343 = sbr.rel (0) target = $region93
    $region92: #{mnist_six_feedforward.1} parent=1 // pred_region
      _
    $region93: #{mnist_six_feedforward.1} parent=1 // pred_fallthru
      _
    // Predicated region
    $region94: #{mnist_six_feedforward.1} parent=1 // pred_check
      _
    $region95: #{mnist_six_feedforward.1} parent=1 // pred_check_branch
      %1345 = sbr.rel (0) target = $region97
    $region96: #{mnist_six_feedforward.1} parent=1 // pred_region
      _
    $region97: #{mnist_six_feedforward.1} parent=1 // pred_fallthru
      _
    // Predicated region
    $region98: #{mnist_six_feedforward.1} parent=1 // pred_check
      _
    $region99: #{mnist_six_feedforward.1} parent=1 // pred_check_branch
      %1347 = sbr.rel (0) target = $region101
    $region100: #{mnist_six_feedforward.1} parent=1 // pred_region
      _
    $region101: #{mnist_six_feedforward.1} parent=1 // pred_fallthru
      _
    // Predicated region
    $region102: #{mnist_six_feedforward.1} parent=1 // pred_check
      _
    $region103: #{mnist_six_feedforward.1} parent=1 // pred_check_branch
      %1349 = sbr.rel (0) target = $region105
    $region104: #{mnist_six_feedforward.1} parent=1 // pred_region
      _
    $region105: #{mnist_six_feedforward.1} parent=1 // pred_fallthru
      _
    // Predicated region
    $region106: #{mnist_six_feedforward.1} parent=1 // pred_check
      _
    $region107: #{mnist_six_feedforward.1} parent=1 // pred_check_branch
      %1351 = sbr.rel (0) target = $region109
    $region108: #{mnist_six_feedforward.1} parent=1 // pred_region
      _
    $region109: #{mnist_six_feedforward.1} parent=1 // pred_fallthru
      _
    // Predicated region
    $region110: #{mnist_six_feedforward.1} parent=1 // pred_check
      _
    $region111: #{mnist_six_feedforward.1} parent=1 // pred_check_branch
      %1353 = sbr.rel (0) target = $region113
    $region112: #{mnist_six_feedforward.1} parent=1 // pred_region
      _
    $region113: #{mnist_six_feedforward.1} parent=1 // pred_fallthru
      _
    // Predicated region
    $region114: #{mnist_six_feedforward.1} parent=1 // pred_check
      _
    $region115: #{mnist_six_feedforward.1} parent=1 // pred_check_branch
      %1355 = sbr.rel (0) target = $region117
    $region116: #{mnist_six_feedforward.1} parent=1 // pred_region
      _
    $region117: #{mnist_six_feedforward.1} parent=1 // pred_fallthru
      _
    // Predicated region
    $region118: #{mnist_six_feedforward.1} parent=1 // pred_check
      _
    $region119: #{mnist_six_feedforward.1} parent=1 // pred_check_branch
      %1357 = sbr.rel (0) target = $region121
    $region120: #{mnist_six_feedforward.1} parent=1 // pred_region
      _
    $region121: #{mnist_six_feedforward.1} parent=1 // pred_fallthru
      _
    %1358 = vsyncpa [#allocation3], 1
    %1359 = vsyncpa [#allocation5], 1
    %1360 = vsyncpa [#allocation8], 1

</llo_original>
